<compile_context>
chip_gen: v5e
topology: v5e:2x2
jax: 0.10.0
libtpu: 0.0.40
codegen_flags: <defaults>
</compile_context>

<pallas_src>
import functools
import math

import jax
import jax.numpy as jnp
from jax.experimental import pallas as pl
from jax.experimental.pallas import tpu as pltpu


def _layernorm(x, w, b, eps=1e-5):
    mu = jnp.mean(x, axis=-1, keepdims=True)
    var = jnp.mean(jnp.square(x - mu), axis=-1, keepdims=True)
    return (x - mu) * jax.lax.rsqrt(var + eps) * w + b


def rab_kernel(x_ref,
               ln1w_ref, ln1b_ref,
               wqkv_ref, bqkv_ref,
               wo_ref, bo_ref,
               ln2w_ref, ln2b_ref,
               wfc_ref, bfc_ref,
               wpr_ref, bpr_ref,
               o_ref,
               *, n_head):
    # x_ref block: (1, L, D) — one batch element.
    x = x_ref[0].astype(jnp.float32)                  # (L, D), fp32 residual path
    L, D = x.shape
    H = n_head
    hd = D // H
    scale = 1.0 / math.sqrt(hd)

    # Hoist all parameter loads once (JAX does not CSE broadcast_in_dim).
    ln1_w = ln1w_ref[0]
    ln1_b = ln1b_ref[0]
    ln2_w = ln2w_ref[0]
    ln2_b = ln2b_ref[0]
    b_qkv = bqkv_ref[0]                               # (3D,) fp32
    b_out = bo_ref[0]                                 # (D,)  fp32
    b_fc = bfc_ref[0]                                 # (4D,) fp32
    b_pr = bpr_ref[0]                                 # (D,)  fp32
    w_qkv = wqkv_ref[...]                             # (D, 3D)   bf16, pre-transposed
    w_out = wo_ref[...]                               # (H, hd, D) bf16, per-head
    w_fc = wfc_ref[...]                               # (D, 4D)   bf16
    w_pr = wpr_ref[...]                               # (4D, D)   bf16
    cdt = w_qkv.dtype                                 # MXU compute dtype (bf16)

    # ---- x + out_proj(MHA(ln_1(x))) ----
    xn = _layernorm(x, ln1_w, ln1_b)                  # fp32 statistics
    qkv = jnp.dot(xn.astype(cdt), w_qkv,
                  preferred_element_type=jnp.float32) + b_qkv   # (L, 3D) fp32 acc
    q = qkv[:, 0 * D:1 * D] * scale                   # PyTorch scales q
    k = qkv[:, 1 * D:2 * D]
    v = qkv[:, 2 * D:3 * D]

    # Head-batched attention: stack heads along a leading batch dim (cheap,
    # major-dim concat) and drive the MXU with batched dots — no lane concat.
    def to_heads(t):                                  # (L, D) -> (H, L, hd)
        return jnp.stack([t[:, h * hd:(h + 1) * hd] for h in range(H)], axis=0)

    qh = to_heads(q).astype(cdt)
    kh = to_heads(k).astype(cdt)
    vh = to_heads(v).astype(cdt)

    s = jnp.einsum("hqd,hkd->hqk", qh, kh,
                   preferred_element_type=jnp.float32)           # (H, L, L)
    s = s - jnp.max(s, axis=-1, keepdims=True)
    p = jnp.exp(s)                                    # unnormalized probs (fp32)
    denom = jnp.sum(p, axis=-1, keepdims=True)        # (H, L, 1)
    o = jnp.einsum("hqk,hkd->hqd", p.astype(cdt), vh,
                   preferred_element_type=jnp.float32)           # (H, L, hd)
    o = o * pl.reciprocal(denom, approx=True)         # softmax normalize on EUP

    # Output projection folded per head (batched over H), then summed — avoids
    # materializing a lane-dim concatenated (L, D) head tensor.
    attn = jnp.einsum("hld,hdk->hlk", o.astype(cdt), w_out,
                      preferred_element_type=jnp.float32)        # (H, L, D)
    attn = jnp.sum(attn, axis=0) + b_out                          # (L, D)

    x1 = x + attn

    # ---- x + c_proj(QuickGELU(c_fc(ln_2(x)))) ----
    xn2 = _layernorm(x1, ln2_w, ln2_b)
    hmid = jnp.dot(xn2.astype(cdt), w_fc,
                   preferred_element_type=jnp.float32) + b_fc     # (L, 4D)
    hmid = hmid * jax.nn.sigmoid(1.702 * hmid)        # QuickGELU (fp32, sigmoid on EUP)
    mlp = jnp.dot(hmid.astype(cdt), w_pr,
                  preferred_element_type=jnp.float32) + b_pr      # (L, D)

    o_ref[0] = (x1 + mlp).astype(o_ref.dtype)


def _vmem_limit_bytes(L, D, H, w_itemsize):
    """Rough residency estimate: weights (double-buffered) + activations."""
    weights = 12 * D * D * w_itemsize          # 3D·D + D·D + 4D·D + 4D·D
    small = 13 * D * 4                         # LN params + biases (fp32)
    io = 2 * L * D * 4                         # x block + out block (fp32)
    inter = (13 * L * D + 2 * H * L * L + H * L * D) * 4
    est = 2 * (weights + small + io) + inter + (4 << 20)
    return int(min(max(est, 32 << 20), 128 << 20))


def residual_attention_block(x, params, n_head, *, compute_dtype=jnp.bfloat16):
    """x: (L, N, D) -> (L, N, D)."""
    L, N, D = x.shape
    assert D % n_head == 0
    hd = D // n_head
    cdt = compute_dtype
    f32 = jnp.float32

    # (L, N, D) -> (N, L, D): one batch element per grid step.
    xt = jnp.transpose(x, (1, 0, 2))

    # Host-side weight prep: pre-transpose (contract on the minor input dim),
    # split out_proj per head, cast to the MXU compute dtype.
    w_qkv = jnp.transpose(params["w_qkv"]).astype(cdt)                          # (D, 3D)
    w_out = jnp.transpose(params["w_out"]).reshape(n_head, hd, D).astype(cdt)   # (H, hd, D)
    w_fc = jnp.transpose(params["w_fc"]).astype(cdt)                            # (D, 4D)
    w_pr = jnp.transpose(params["w_proj"]).astype(cdt)                          # (4D, D)

    ln1_w = params["ln1_w"].astype(f32)
    ln1_b = params["ln1_b"].astype(f32)
    ln2_w = params["ln2_w"].astype(f32)
    ln2_b = params["ln2_b"].astype(f32)
    b_qkv = params["b_qkv"].astype(f32)
    b_out = params["b_out"].astype(f32)
    b_fc = params["b_fc"].astype(f32)
    b_pr = params["b_proj"].astype(f32)

    def full2(shape):
        return pl.BlockSpec(shape, lambda n: (0, 0))

    in_specs = [
        pl.BlockSpec((1, L, D), lambda n: (n, 0, 0)),          # x
        full2((1, D)), full2((1, D)),                          # ln_1 w, b
        full2((D, 3 * D)), full2((1, 3 * D)),                  # in_proj W^T, b
        pl.BlockSpec((n_head, hd, D), lambda n: (0, 0, 0)),    # out_proj W (per head)
        full2((1, D)),                                         # out_proj b
        full2((1, D)), full2((1, D)),                          # ln_2 w, b
        full2((D, 4 * D)), full2((1, 4 * D)),                  # mlp.c_fc W^T, b
        full2((4 * D, D)), full2((1, D)),                      # mlp.c_proj W^T, b
    ]

    out = pl.pallas_call(
        functools.partial(rab_kernel, n_head=n_head),
        out_shape=jax.ShapeDtypeStruct((N, L, D), x.dtype),
        grid=(N,),
        in_specs=in_specs,
        out_specs=pl.BlockSpec((1, L, D), lambda n: (n, 0, 0)),
        compiler_params=pltpu.CompilerParams(
            dimension_semantics=("parallel",),
            vmem_limit_bytes=_vmem_limit_bytes(L, D, n_head,
                                               jnp.dtype(cdt).itemsize)),
    )(xt,
      ln1_w, ln1_b,
      w_qkv, b_qkv,
      w_out, b_out,
      ln2_w, ln2_b,
      w_fc, b_fc,
      w_pr, b_pr)

    return jnp.transpose(out, (1, 0, 2))               # back to (L, N, D)


def reference_block(x, params, n_head):
    """Pure-JAX fp32 reference mirroring PyTorch semantics."""
    L, N, D = x.shape
    hd = D // n_head
    ln1_w, ln1_b = params["ln1_w"][0], params["ln1_b"][0]
    ln2_w, ln2_b = params["ln2_w"][0], params["ln2_b"][0]

    xn = _layernorm(x.astype(jnp.float32), ln1_w, ln1_b)
    qkv = jnp.einsum("lnd,ed->lne", xn, params["w_qkv"]) + params["b_qkv"][0]
    q, k, v = qkv[..., :D], qkv[..., D:2 * D], qkv[..., 2 * D:]
    q = q * (1.0 / math.sqrt(hd))

    def split(t):  # (L, N, D) -> (N, H, L, hd)
        return jnp.transpose(t.reshape(L, N, n_head, hd), (1, 2, 0, 3))

    qh, kh, vh = split(q), split(k), split(v)
    s = jnp.einsum("nhld,nhmd->nhlm", qh, kh)
    p = jax.nn.softmax(s, axis=-1)
    o = jnp.einsum("nhlm,nhmd->nhld", p, vh)
    o = jnp.transpose(o, (2, 0, 1, 3)).reshape(L, N, D)
    attn = jnp.einsum("lnd,ed->lne", o, params["w_out"]) + params["b_out"][0]

    x1 = x + attn
    xn2 = _layernorm(x1.astype(jnp.float32), ln2_w, ln2_b)
    h = jnp.einsum("lnd,ed->lne", xn2, params["w_fc"]) + params["b_fc"][0]
    h = h * jax.nn.sigmoid(1.702 * h)
    mlp = jnp.einsum("lne,de->lnd", h, params["w_proj"]) + params["b_proj"][0]
    return x1 + mlp


def make_params(key, d_model):
    D = d_model
    ks = jax.random.split(key, 6)
    std = 0.02
    return {
        "ln1_w": jnp.ones((1, D), jnp.float32),
        "ln1_b": jnp.zeros((1, D), jnp.float32),
        "w_qkv": std * jax.random.normal(ks[0], (3 * D, D), jnp.float32),
        "b_qkv": std * jax.random.normal(ks[1], (1, 3 * D), jnp.float32),
        "w_out": std * jax.random.normal(ks[2], (D, D), jnp.float32),
        "b_out": jnp.zeros((1, D), jnp.float32),
        "ln2_w": jnp.ones((1, D), jnp.float32),
        "ln2_b": jnp.zeros((1, D), jnp.float32),
        "w_fc": std * jax.random.normal(ks[3], (4 * D, D), jnp.float32),
        "b_fc": std * jax.random.normal(ks[4], (1, 4 * D), jnp.float32),
        "w_proj": std * jax.random.normal(ks[5], (D, 4 * D), jnp.float32),
        "b_proj": jnp.zeros((1, D), jnp.float32),
    }


if __name__ == "__main__":
    # small shapes: seq L=16, batch N=2, d_model=128, heads=4 (head_dim=32)
    L, N, D, H = 16, 2, 128, 4
    key = jax.random.PRNGKey(0)
    kx, kp = jax.random.split(key)
    x = jax.random.normal(kx, (L, N, D), jnp.float32)
    params = make_params(kp, D)

    out = residual_attention_block(x, params, H)
    out = jax.block_until_ready(out)

    ref = reference_block(x, params, H)
    assert out.shape == (L, N, D)
    # bf16 MXU operands with fp32 accumulation -> relaxed tolerance vs fp32 ref.
    max_err = float(jnp.max(jnp.abs(out - ref)))
    assert max_err < 2e-2, max_err

    print("KERNEL_OK")
</pallas_src>

<mosaic_0001>
module attributes {stable_mosaic.version = 11 : i64} {
  func.func @rab_kernel(%arg0: i32, %arg1: memref<1x16x128xf32, #tpu.memory_space<vmem>>, %arg2: memref<1x128xf32, #tpu.memory_space<vmem>>, %arg3: memref<1x128xf32, #tpu.memory_space<vmem>>, %arg4: memref<128x384xbf16, #tpu.memory_space<vmem>>, %arg5: memref<1x384xf32, #tpu.memory_space<vmem>>, %arg6: memref<4x32x128xbf16, #tpu.memory_space<vmem>>, %arg7: memref<1x128xf32, #tpu.memory_space<vmem>>, %arg8: memref<1x128xf32, #tpu.memory_space<vmem>>, %arg9: memref<1x128xf32, #tpu.memory_space<vmem>>, %arg10: memref<128x512xbf16, #tpu.memory_space<vmem>>, %arg11: memref<1x512xf32, #tpu.memory_space<vmem>>, %arg12: memref<512x128xbf16, #tpu.memory_space<vmem>>, %arg13: memref<1x128xf32, #tpu.memory_space<vmem>>, %arg14: memref<1x16x128xf32, #tpu.memory_space<vmem>>) attributes {dimension_semantics = [#tpu.dimension_semantics<parallel>], iteration_bounds = array<i64: 2>, scalar_prefetch = 0 : i64, scratch_operands = 0 : i64, tpu.core_type = #tpu.core_type<tc>, window_params = [{transform_indices = @transform_0, window_bounds = array<i64: 1, 16, 128>}, {pipeline_mode = #tpu.pipeline_mode<synchronous>, transform_indices = @transform_1, window_bounds = array<i64: 1, 128>}, {pipeline_mode = #tpu.pipeline_mode<synchronous>, transform_indices = @transform_2, window_bounds = array<i64: 1, 128>}, {pipeline_mode = #tpu.pipeline_mode<synchronous>, transform_indices = @transform_3, window_bounds = array<i64: 128, 384>}, {pipeline_mode = #tpu.pipeline_mode<synchronous>, transform_indices = @transform_4, window_bounds = array<i64: 1, 384>}, {pipeline_mode = #tpu.pipeline_mode<synchronous>, transform_indices = @transform_5, window_bounds = array<i64: 4, 32, 128>}, {pipeline_mode = #tpu.pipeline_mode<synchronous>, transform_indices = @transform_6, window_bounds = array<i64: 1, 128>}, {pipeline_mode = #tpu.pipeline_mode<synchronous>, transform_indices = @transform_7, window_bounds = array<i64: 1, 128>}, {pipeline_mode = #tpu.pipeline_mode<synchronous>, transform_indices = @transform_8, window_bounds = array<i64: 1, 128>}, {pipeline_mode = #tpu.pipeline_mode<synchronous>, transform_indices = @transform_9, window_bounds = array<i64: 128, 512>}, {pipeline_mode = #tpu.pipeline_mode<synchronous>, transform_indices = @transform_10, window_bounds = array<i64: 1, 512>}, {pipeline_mode = #tpu.pipeline_mode<synchronous>, transform_indices = @transform_11, window_bounds = array<i64: 512, 128>}, {pipeline_mode = #tpu.pipeline_mode<synchronous>, transform_indices = @transform_12, window_bounds = array<i64: 1, 128>}, {transform_indices = @transform_13, window_bounds = array<i64: 1, 16, 128>}]} {
    %c0 = arith.constant 0 : index
    %c0_0 = arith.constant 0 : index
    %c0_1 = arith.constant 0 : index
    %0 = vector.load %arg1[%c0, %c0_0, %c0_1] : memref<1x16x128xf32, #tpu.memory_space<vmem>>, vector<1x16x128xf32>
    %1 = vector.shape_cast %0 : vector<1x16x128xf32> to vector<16x128xf32>
    %c0_2 = arith.constant 0 : index
    %c0_3 = arith.constant 0 : index
    %2 = vector.load %arg2[%c0_2, %c0_3] : memref<1x128xf32, #tpu.memory_space<vmem>>, vector<1x128xf32>
    %3 = vector.shape_cast %2 : vector<1x128xf32> to vector<128xf32>
    %c0_4 = arith.constant 0 : index
    %c0_5 = arith.constant 0 : index
    %4 = vector.load %arg3[%c0_4, %c0_5] : memref<1x128xf32, #tpu.memory_space<vmem>>, vector<1x128xf32>
    %5 = vector.shape_cast %4 : vector<1x128xf32> to vector<128xf32>
    %c0_6 = arith.constant 0 : index
    %c0_7 = arith.constant 0 : index
    %6 = vector.load %arg8[%c0_6, %c0_7] : memref<1x128xf32, #tpu.memory_space<vmem>>, vector<1x128xf32>
    %7 = vector.shape_cast %6 : vector<1x128xf32> to vector<128xf32>
    %c0_8 = arith.constant 0 : index
    %c0_9 = arith.constant 0 : index
    %8 = vector.load %arg9[%c0_8, %c0_9] : memref<1x128xf32, #tpu.memory_space<vmem>>, vector<1x128xf32>
    %9 = vector.shape_cast %8 : vector<1x128xf32> to vector<128xf32>
    %c0_10 = arith.constant 0 : index
    %c0_11 = arith.constant 0 : index
    %10 = vector.load %arg5[%c0_10, %c0_11] : memref<1x384xf32, #tpu.memory_space<vmem>>, vector<1x384xf32>
    %11 = vector.shape_cast %10 : vector<1x384xf32> to vector<384xf32>
    %c0_12 = arith.constant 0 : index
    %c0_13 = arith.constant 0 : index
    %12 = vector.load %arg7[%c0_12, %c0_13] : memref<1x128xf32, #tpu.memory_space<vmem>>, vector<1x128xf32>
    %13 = vector.shape_cast %12 : vector<1x128xf32> to vector<128xf32>
    %c0_14 = arith.constant 0 : index
    %c0_15 = arith.constant 0 : index
    %14 = vector.load %arg11[%c0_14, %c0_15] : memref<1x512xf32, #tpu.memory_space<vmem>>, vector<1x512xf32>
    %15 = vector.shape_cast %14 : vector<1x512xf32> to vector<512xf32>
    %c0_16 = arith.constant 0 : index
    %c0_17 = arith.constant 0 : index
    %16 = vector.load %arg13[%c0_16, %c0_17] : memref<1x128xf32, #tpu.memory_space<vmem>>, vector<1x128xf32>
    %17 = vector.shape_cast %16 : vector<1x128xf32> to vector<128xf32>
    %c0_18 = arith.constant 0 : index
    %c0_19 = arith.constant 0 : index
    %18 = vector.load %arg4[%c0_18, %c0_19] : memref<128x384xbf16, #tpu.memory_space<vmem>>, vector<128x384xbf16>
    %c0_20 = arith.constant 0 : index
    %c0_21 = arith.constant 0 : index
    %c0_22 = arith.constant 0 : index
    %19 = vector.load %arg6[%c0_20, %c0_21, %c0_22] : memref<4x32x128xbf16, #tpu.memory_space<vmem>>, vector<4x32x128xbf16>
    %c0_23 = arith.constant 0 : index
    %c0_24 = arith.constant 0 : index
    %20 = vector.load %arg10[%c0_23, %c0_24] : memref<128x512xbf16, #tpu.memory_space<vmem>>, vector<128x512xbf16>
    %c0_25 = arith.constant 0 : index
    %c0_26 = arith.constant 0 : index
    %21 = vector.load %arg12[%c0_25, %c0_26] : memref<512x128xbf16, #tpu.memory_space<vmem>>, vector<512x128xbf16>
    %cst = arith.constant dense<0.000000e+00> : vector<16xf32>
    %22 = vector.multi_reduction <add>, %1, %cst [1] : vector<16x128xf32> to vector<16xf32>
    %23 = vector.shape_cast %22 : vector<16xf32> to vector<16x1xf32>
    %cst_27 = arith.constant 1.280000e+02 : f32
    %24 = vector.broadcast %cst_27 : f32 to vector<16x1xf32>
    %25 = arith.divf %23, %24 : vector<16x1xf32>
    %26 = vector.broadcast %25 : vector<16x1xf32> to vector<16x128xf32>
    %27 = arith.subf %1, %26 : vector<16x128xf32>
    %28 = arith.mulf %27, %27 : vector<16x128xf32>
    %cst_28 = arith.constant dense<0.000000e+00> : vector<16xf32>
    %29 = vector.multi_reduction <add>, %28, %cst_28 [1] : vector<16x128xf32> to vector<16xf32>
    %30 = vector.shape_cast %29 : vector<16xf32> to vector<16x1xf32>
    %cst_29 = arith.constant 1.280000e+02 : f32
    %31 = vector.broadcast %cst_29 : f32 to vector<16x1xf32>
    %32 = arith.divf %30, %31 : vector<16x1xf32>
    %33 = vector.broadcast %25 : vector<16x1xf32> to vector<16x128xf32>
    %34 = arith.subf %1, %33 : vector<16x128xf32>
    %cst_30 = arith.constant 9.99999974E-6 : f32
    %35 = vector.broadcast %cst_30 : f32 to vector<16x1xf32>
    %36 = arith.addf %32, %35 : vector<16x1xf32>
    %37 = math.rsqrt %36 : vector<16x1xf32>
    %38 = vector.broadcast %37 : vector<16x1xf32> to vector<16x128xf32>
    %39 = arith.mulf %34, %38 : vector<16x128xf32>
    %40 = vector.shape_cast %3 : vector<128xf32> to vector<1x128xf32>
    %41 = vector.broadcast %40 : vector<1x128xf32> to vector<16x128xf32>
    %42 = arith.mulf %39, %41 : vector<16x128xf32>
    %43 = vector.shape_cast %5 : vector<128xf32> to vector<1x128xf32>
    %44 = vector.broadcast %43 : vector<1x128xf32> to vector<16x128xf32>
    %45 = arith.addf %42, %44 : vector<16x128xf32>
    %46 = arith.truncf %45 : vector<16x128xf32> to vector<16x128xbf16>
    %cst_31 = arith.constant dense<0.000000e+00> : vector<16x384xf32>
    %47 = tpu.matmul %46, %18, %cst_31 {dimension_numbers = #tpu.dot_dimension_numbers<[1], [0], [0], [1], [0, 0, 1, 1], [], []>} : vector<16x128xbf16>, vector<128x384xbf16>, vector<16x384xf32> -> vector<16x384xf32>
    %48 = vector.shape_cast %11 : vector<384xf32> to vector<1x384xf32>
    %49 = vector.broadcast %48 : vector<1x384xf32> to vector<16x384xf32>
    %50 = arith.addf %47, %49 : vector<16x384xf32>
    %51 = vector.extract_strided_slice %50 {offsets = [0, 0], sizes = [16, 128], strides = [1, 1]} : vector<16x384xf32> to vector<16x128xf32>
    %cst_32 = arith.constant 0.176776692 : f32
    %52 = vector.broadcast %cst_32 : f32 to vector<16x128xf32>
    %53 = arith.mulf %51, %52 : vector<16x128xf32>
    %54 = vector.extract_strided_slice %50 {offsets = [0, 128], sizes = [16, 128], strides = [1, 1]} : vector<16x384xf32> to vector<16x128xf32>
    %55 = vector.extract_strided_slice %50 {offsets = [0, 256], sizes = [16, 128], strides = [1, 1]} : vector<16x384xf32> to vector<16x128xf32>
    %56 = vector.extract_strided_slice %53 {offsets = [0, 0], sizes = [16, 32], strides = [1, 1]} : vector<16x128xf32> to vector<16x32xf32>
    %57 = vector.extract_strided_slice %53 {offsets = [0, 32], sizes = [16, 32], strides = [1, 1]} : vector<16x128xf32> to vector<16x32xf32>
    %58 = vector.extract_strided_slice %53 {offsets = [0, 64], sizes = [16, 32], strides = [1, 1]} : vector<16x128xf32> to vector<16x32xf32>
    %59 = vector.extract_strided_slice %53 {offsets = [0, 96], sizes = [16, 32], strides = [1, 1]} : vector<16x128xf32> to vector<16x32xf32>
    %60 = vector.shape_cast %56 : vector<16x32xf32> to vector<1x16x32xf32>
    %61 = vector.shape_cast %57 : vector<16x32xf32> to vector<1x16x32xf32>
    %62 = vector.shape_cast %58 : vector<16x32xf32> to vector<1x16x32xf32>
    %63 = vector.shape_cast %59 : vector<16x32xf32> to vector<1x16x32xf32>
    %64 = tpu.concatenate %60, %61, %62, %63 in 0 : vector<1x16x32xf32>, vector<1x16x32xf32>, vector<1x16x32xf32>, vector<1x16x32xf32> -> vector<4x16x32xf32>
    %65 = arith.truncf %64 : vector<4x16x32xf32> to vector<4x16x32xbf16>
    %66 = vector.extract_strided_slice %54 {offsets = [0, 0], sizes = [16, 32], strides = [1, 1]} : vector<16x128xf32> to vector<16x32xf32>
    %67 = vector.extract_strided_slice %54 {offsets = [0, 32], sizes = [16, 32], strides = [1, 1]} : vector<16x128xf32> to vector<16x32xf32>
    %68 = vector.extract_strided_slice %54 {offsets = [0, 64], sizes = [16, 32], strides = [1, 1]} : vector<16x128xf32> to vector<16x32xf32>
    %69 = vector.extract_strided_slice %54 {offsets = [0, 96], sizes = [16, 32], strides = [1, 1]} : vector<16x128xf32> to vector<16x32xf32>
    %70 = vector.shape_cast %66 : vector<16x32xf32> to vector<1x16x32xf32>
    %71 = vector.shape_cast %67 : vector<16x32xf32> to vector<1x16x32xf32>
    %72 = vector.shape_cast %68 : vector<16x32xf32> to vector<1x16x32xf32>
    %73 = vector.shape_cast %69 : vector<16x32xf32> to vector<1x16x32xf32>
    %74 = tpu.concatenate %70, %71, %72, %73 in 0 : vector<1x16x32xf32>, vector<1x16x32xf32>, vector<1x16x32xf32>, vector<1x16x32xf32> -> vector<4x16x32xf32>
    %75 = arith.truncf %74 : vector<4x16x32xf32> to vector<4x16x32xbf16>
    %76 = vector.extract_strided_slice %55 {offsets = [0, 0], sizes = [16, 32], strides = [1, 1]} : vector<16x128xf32> to vector<16x32xf32>
    %77 = vector.extract_strided_slice %55 {offsets = [0, 32], sizes = [16, 32], strides = [1, 1]} : vector<16x128xf32> to vector<16x32xf32>
    %78 = vector.extract_strided_slice %55 {offsets = [0, 64], sizes = [16, 32], strides = [1, 1]} : vector<16x128xf32> to vector<16x32xf32>
    %79 = vector.extract_strided_slice %55 {offsets = [0, 96], sizes = [16, 32], strides = [1, 1]} : vector<16x128xf32> to vector<16x32xf32>
    %80 = vector.shape_cast %76 : vector<16x32xf32> to vector<1x16x32xf32>
    %81 = vector.shape_cast %77 : vector<16x32xf32> to vector<1x16x32xf32>
    %82 = vector.shape_cast %78 : vector<16x32xf32> to vector<1x16x32xf32>
    %83 = vector.shape_cast %79 : vector<16x32xf32> to vector<1x16x32xf32>
    %84 = tpu.concatenate %80, %81, %82, %83 in 0 : vector<1x16x32xf32>, vector<1x16x32xf32>, vector<1x16x32xf32>, vector<1x16x32xf32> -> vector<4x16x32xf32>
    %85 = arith.truncf %84 : vector<4x16x32xf32> to vector<4x16x32xbf16>
    "tpu.trace_start"() <{level = 10 : i32, message = "hqd,hkd->hqk"}> : () -> ()
    %cst_33 = arith.constant dense<0.000000e+00> : vector<4x16x16xf32>
    %86 = tpu.matmul %65, %75, %cst_33 {dimension_numbers = #tpu.dot_dimension_numbers<[2], [2], [1], [1], [0, 0, 0, 1, 1, 1], [0], [0]>} : vector<4x16x32xbf16>, vector<4x16x32xbf16>, vector<4x16x16xf32> -> vector<4x16x16xf32>
    "tpu.trace_stop"() : () -> ()
    %cst_34 = arith.constant dense<0xFF800000> : vector<4x16xf32>
    %87 = vector.multi_reduction <maximumf>, %86, %cst_34 [2] : vector<4x16x16xf32> to vector<4x16xf32>
    %88 = vector.shape_cast %87 : vector<4x16xf32> to vector<4x16x1xf32>
    %89 = vector.broadcast %88 : vector<4x16x1xf32> to vector<4x16x16xf32>
    %90 = arith.subf %86, %89 : vector<4x16x16xf32>
    %91 = math.exp %90 : vector<4x16x16xf32>
    %cst_35 = arith.constant dense<0.000000e+00> : vector<4x16xf32>
    %92 = vector.multi_reduction <add>, %91, %cst_35 [2] : vector<4x16x16xf32> to vector<4x16xf32>
    %93 = vector.shape_cast %92 : vector<4x16xf32> to vector<4x16x1xf32>
    %94 = arith.truncf %91 : vector<4x16x16xf32> to vector<4x16x16xbf16>
    "tpu.trace_start"() <{level = 10 : i32, message = "hqk,hkd->hqd"}> : () -> ()
    %cst_36 = arith.constant dense<0.000000e+00> : vector<4x16x32xf32>
    %95 = tpu.matmul %94, %85, %cst_36 {dimension_numbers = #tpu.dot_dimension_numbers<[2], [1], [1], [2], [0, 0, 0, 1, 1, 2], [0], [0]>} : vector<4x16x16xbf16>, vector<4x16x32xbf16>, vector<4x16x32xf32> -> vector<4x16x32xf32>
    "tpu.trace_stop"() : () -> ()
    %96 = tpu.reciprocal %93 {approx = true} : vector<4x16x1xf32> -> vector<4x16x1xf32>
    %97 = vector.broadcast %96 : vector<4x16x1xf32> to vector<4x16x32xf32>
    %98 = arith.mulf %95, %97 : vector<4x16x32xf32>
    %99 = arith.truncf %98 : vector<4x16x32xf32> to vector<4x16x32xbf16>
    "tpu.trace_start"() <{level = 10 : i32, message = "hld,hdk->hlk"}> : () -> ()
    %cst_37 = arith.constant dense<0.000000e+00> : vector<4x16x128xf32>
    %100 = tpu.matmul %99, %19, %cst_37 {dimension_numbers = #tpu.dot_dimension_numbers<[2], [1], [1], [2], [0, 0, 0, 1, 1, 2], [0], [0]>} : vector<4x16x32xbf16>, vector<4x32x128xbf16>, vector<4x16x128xf32> -> vector<4x16x128xf32>
    "tpu.trace_stop"() : () -> ()
    %cst_38 = arith.constant dense<0.000000e+00> : vector<16x128xf32>
    %101 = vector.multi_reduction <add>, %100, %cst_38 [0] : vector<4x16x128xf32> to vector<16x128xf32>
    %102 = vector.shape_cast %13 : vector<128xf32> to vector<1x128xf32>
    %103 = vector.broadcast %102 : vector<1x128xf32> to vector<16x128xf32>
    %104 = arith.addf %101, %103 : vector<16x128xf32>
    %105 = arith.addf %1, %104 : vector<16x128xf32>
    %cst_39 = arith.constant dense<0.000000e+00> : vector<16xf32>
    %106 = vector.multi_reduction <add>, %105, %cst_39 [1] : vector<16x128xf32> to vector<16xf32>
    %107 = vector.shape_cast %106 : vector<16xf32> to vector<16x1xf32>
    %cst_40 = arith.constant 1.280000e+02 : f32
    %108 = vector.broadcast %cst_40 : f32 to vector<16x1xf32>
    %109 = arith.divf %107, %108 : vector<16x1xf32>
    %110 = vector.broadcast %109 : vector<16x1xf32> to vector<16x128xf32>
    %111 = arith.subf %105, %110 : vector<16x128xf32>
    %112 = arith.mulf %111, %111 : vector<16x128xf32>
    %cst_41 = arith.constant dense<0.000000e+00> : vector<16xf32>
    %113 = vector.multi_reduction <add>, %112, %cst_41 [1] : vector<16x128xf32> to vector<16xf32>
    %114 = vector.shape_cast %113 : vector<16xf32> to vector<16x1xf32>
    %cst_42 = arith.constant 1.280000e+02 : f32
    %115 = vector.broadcast %cst_42 : f32 to vector<16x1xf32>
    %116 = arith.divf %114, %115 : vector<16x1xf32>
    %117 = vector.broadcast %109 : vector<16x1xf32> to vector<16x128xf32>
    %118 = arith.subf %105, %117 : vector<16x128xf32>
    %cst_43 = arith.constant 9.99999974E-6 : f32
    %119 = vector.broadcast %cst_43 : f32 to vector<16x1xf32>
    %120 = arith.addf %116, %119 : vector<16x1xf32>
    %121 = math.rsqrt %120 : vector<16x1xf32>
    %122 = vector.broadcast %121 : vector<16x1xf32> to vector<16x128xf32>
    %123 = arith.mulf %118, %122 : vector<16x128xf32>
    %124 = vector.shape_cast %7 : vector<128xf32> to vector<1x128xf32>
    %125 = vector.broadcast %124 : vector<1x128xf32> to vector<16x128xf32>
    %126 = arith.mulf %123, %125 : vector<16x128xf32>
    %127 = vector.shape_cast %9 : vector<128xf32> to vector<1x128xf32>
    %128 = vector.broadcast %127 : vector<1x128xf32> to vector<16x128xf32>
    %129 = arith.addf %126, %128 : vector<16x128xf32>
    %130 = arith.truncf %129 : vector<16x128xf32> to vector<16x128xbf16>
    %cst_44 = arith.constant dense<0.000000e+00> : vector<16x512xf32>
    %131 = tpu.matmul %130, %20, %cst_44 {dimension_numbers = #tpu.dot_dimension_numbers<[1], [0], [0], [1], [0, 0, 1, 1], [], []>} : vector<16x128xbf16>, vector<128x512xbf16>, vector<16x512xf32> -> vector<16x512xf32>
    %132 = vector.shape_cast %15 : vector<512xf32> to vector<1x512xf32>
    %133 = vector.broadcast %132 : vector<1x512xf32> to vector<16x512xf32>
    %134 = arith.addf %131, %133 : vector<16x512xf32>
    %cst_45 = arith.constant 1.702000e+00 : f32
    %135 = vector.broadcast %cst_45 : f32 to vector<16x512xf32>
    %136 = arith.mulf %135, %134 : vector<16x512xf32>
    %137 = arith.negf %136 : vector<16x512xf32>
    %138 = math.exp %137 : vector<16x512xf32>
    %cst_46 = arith.constant 1.000000e+00 : f32
    %139 = vector.broadcast %cst_46 : f32 to vector<16x512xf32>
    %140 = arith.addf %139, %138 : vector<16x512xf32>
    %141 = arith.divf %139, %140 : vector<16x512xf32>
    %142 = arith.mulf %134, %141 : vector<16x512xf32>
    %143 = arith.truncf %142 : vector<16x512xf32> to vector<16x512xbf16>
    %cst_47 = arith.constant dense<0.000000e+00> : vector<16x128xf32>
    %144 = tpu.matmul %143, %21, %cst_47 {dimension_numbers = #tpu.dot_dimension_numbers<[1], [0], [0], [1], [0, 0, 1, 1], [], []>} : vector<16x512xbf16>, vector<512x128xbf16>, vector<16x128xf32> -> vector<16x128xf32>
    %145 = vector.shape_cast %17 : vector<128xf32> to vector<1x128xf32>
    %146 = vector.broadcast %145 : vector<1x128xf32> to vector<16x128xf32>
    %147 = arith.addf %144, %146 : vector<16x128xf32>
    %148 = arith.addf %105, %147 : vector<16x128xf32>
    %c0_48 = arith.constant 0 : index
    %c0_49 = arith.constant 0 : index
    %c0_50 = arith.constant 0 : index
    %149 = vector.load %arg14[%c0_48, %c0_49, %c0_50] : memref<1x16x128xf32, #tpu.memory_space<vmem>>, vector<1x16x128xf32>
    %150 = vector.shape_cast %149 : vector<1x16x128xf32> to vector<16x128xf32>
    %151 = vector.shape_cast %148 : vector<16x128xf32> to vector<1x16x128xf32>
    tpu.vector_store %arg14[%c0_48, %c0_49, %c0_50], %151 {strides = array<i32>} : memref<1x16x128xf32, #tpu.memory_space<vmem>>, vector<1x16x128xf32>,
    return
  }
  func.func @transform_0(%arg0: i32) -> (i32, i32, i32) {
    %c0_i32 = arith.constant 0 : i32
    %c0_i32_0 = arith.constant 0 : i32
    %c0_i32_1 = arith.constant 0 : i32
    return %arg0, %c0_i32, %c0_i32_0 : i32, i32, i32
  }
  func.func @transform_1(%arg0: i32) -> (i32, i32) {
    %c0_i32 = arith.constant 0 : i32
    %c0_i32_0 = arith.constant 0 : i32
    %c0_i32_1 = arith.constant 0 : i32
    return %c0_i32, %c0_i32_0 : i32, i32
  }
  func.func @transform_2(%arg0: i32) -> (i32, i32) {
    %c0_i32 = arith.constant 0 : i32
    %c0_i32_0 = arith.constant 0 : i32
    %c0_i32_1 = arith.constant 0 : i32
    return %c0_i32, %c0_i32_0 : i32, i32
  }
  func.func @transform_3(%arg0: i32) -> (i32, i32) {
    %c0_i32 = arith.constant 0 : i32
    %c0_i32_0 = arith.constant 0 : i32
    %c0_i32_1 = arith.constant 0 : i32
    return %c0_i32, %c0_i32_0 : i32, i32
  }
  func.func @transform_4(%arg0: i32) -> (i32, i32) {
    %c0_i32 = arith.constant 0 : i32
    %c0_i32_0 = arith.constant 0 : i32
    %c0_i32_1 = arith.constant 0 : i32
    return %c0_i32, %c0_i32_0 : i32, i32
  }
  func.func @transform_5(%arg0: i32) -> (i32, i32, i32) {
    %c0_i32 = arith.constant 0 : i32
    %c0_i32_0 = arith.constant 0 : i32
    %c0_i32_1 = arith.constant 0 : i32
    %c0_i32_2 = arith.constant 0 : i32
    return %c0_i32, %c0_i32_0, %c0_i32_1 : i32, i32, i32
  }
  func.func @transform_6(%arg0: i32) -> (i32, i32) {
    %c0_i32 = arith.constant 0 : i32
    %c0_i32_0 = arith.constant 0 : i32
    %c0_i32_1 = arith.constant 0 : i32
    return %c0_i32, %c0_i32_0 : i32, i32
  }
  func.func @transform_7(%arg0: i32) -> (i32, i32) {
    %c0_i32 = arith.constant 0 : i32
    %c0_i32_0 = arith.constant 0 : i32
    %c0_i32_1 = arith.constant 0 : i32
    return %c0_i32, %c0_i32_0 : i32, i32
  }
  func.func @transform_8(%arg0: i32) -> (i32, i32) {
    %c0_i32 = arith.constant 0 : i32
    %c0_i32_0 = arith.constant 0 : i32
    %c0_i32_1 = arith.constant 0 : i32
    return %c0_i32, %c0_i32_0 : i32, i32
  }
  func.func @transform_9(%arg0: i32) -> (i32, i32) {
    %c0_i32 = arith.constant 0 : i32
    %c0_i32_0 = arith.constant 0 : i32
    %c0_i32_1 = arith.constant 0 : i32
    return %c0_i32, %c0_i32_0 : i32, i32
  }
  func.func @transform_10(%arg0: i32) -> (i32, i32) {
    %c0_i32 = arith.constant 0 : i32
    %c0_i32_0 = arith.constant 0 : i32
    %c0_i32_1 = arith.constant 0 : i32
    return %c0_i32, %c0_i32_0 : i32, i32
  }
  func.func @transform_11(%arg0: i32) -> (i32, i32) {
    %c0_i32 = arith.constant 0 : i32
    %c0_i32_0 = arith.constant 0 : i32
    %c0_i32_1 = arith.constant 0 : i32
    return %c0_i32, %c0_i32_0 : i32, i32
  }
  func.func @transform_12(%arg0: i32) -> (i32, i32) {
    %c0_i32 = arith.constant 0 : i32
    %c0_i32_0 = arith.constant 0 : i32
    %c0_i32_1 = arith.constant 0 : i32
    return %c0_i32, %c0_i32_0 : i32, i32
  }
  func.func @transform_13(%arg0: i32) -> (i32, i32, i32) {
    %c0_i32 = arith.constant 0 : i32
    %c0_i32_0 = arith.constant 0 : i32
    %c0_i32_1 = arith.constant 0 : i32
    return %arg0, %c0_i32, %c0_i32_0 : i32, i32, i32
  }
}

</mosaic_0001>

<llo_original>
// kernel: tpu_custom_call.1
$region0: #{tpu_custom_call.1}
  #allocation0 [shape = 'u32[]', space=smem, size = 0x4, offset = 0x4, fixed_abs, tag = 'smem constant byte address 0x4 - core index']
  #allocation1 [shape = 'u32[72,128]{1,0:T(1,128)}', space=vmem, size = 0x9000, scoped, tag = 'internal scratch']
  %s0 = inlined_call_operand.hbm [shape: f32[2,16,128], index: 0, kind: input, shape index: {}]
  %s1 = inlined_call_operand.hbm [shape: f32[1,128], index: 1, kind: input, shape index: {}]
  %s2 = inlined_call_operand.hbm [shape: f32[1,128], index: 2, kind: input, shape index: {}]
  %s3 = inlined_call_operand.hbm [shape: bf16[128,384], index: 3, kind: input, shape index: {}]
  %s4 = inlined_call_operand.vmem [shape: f32[1,384], index: 4, kind: input, shape index: {}]
  %s5 = inlined_call_operand.hbm [shape: bf16[4,32,128], index: 5, kind: input, shape index: {}]
  %s6 = inlined_call_operand.hbm [shape: f32[1,128], index: 6, kind: input, shape index: {}]
  %s7 = inlined_call_operand.hbm [shape: f32[1,128], index: 7, kind: input, shape index: {}]
  %s8 = inlined_call_operand.hbm [shape: f32[1,128], index: 8, kind: input, shape index: {}]
  %s9 = inlined_call_operand.hbm [shape: bf16[128,512], index: 9, kind: input, shape index: {}]
  %s10 = inlined_call_operand.vmem [shape: f32[1,512], index: 10, kind: input, shape index: {}]
  %s11 = inlined_call_operand.hbm [shape: bf16[512,128], index: 11, kind: input, shape index: {}]
  %s12 = inlined_call_operand.vmem [shape: f32[1,128], index: 12, kind: input, shape index: {}]
  %s13 = inlined_call_operand.hbm [shape: f32[2,16,128], index: 13, kind: output, shape index: {}]
  %s14 = sld [smem:[#allocation0]]
  $region125: #{tpu_custom_call.1} parent=0
    _
  %s16 = ssub.s32 1, %s14
  %s17 = scalar_select 0, %s16, %s14
  $region1: #{tpu_custom_call.1} parent=0
    #allocation2 [shape = 'u8[16384]{0}', space=vmem, size = 0x4000, scoped, tag = 'input window, operand 0']
    #allocation3 [shape = 's32[2]{0}', space=sflag, size = 0x8, scoped, tag = 'scoped memory for tpu_custom_call.1']
    #allocation4 [shape = 's32[2]{0}', space=sflag, size = 0x8, scoped, tag = 'scoped memory for tpu_custom_call.1']
    #allocation5 [shape = 'u8[512]{0}', space=vmem, size = 0x400, scoped, tag = 'input window, operand 1, single buffered']
    #allocation6 [shape = 's32[1]{0}', space=sflag, size = 0x4, scoped, tag = 'scoped memory for tpu_custom_call.1']
    #allocation7 [shape = 'u8[512]{0}', space=vmem, size = 0x400, scoped, tag = 'input window, operand 2, single buffered']
    #allocation8 [shape = 'u8[98304]{0}', space=vmem, size = 0x18000, scoped, tag = 'input window, operand 3, single buffered']
    #allocation9 [shape = 's32[1]{0}', space=sflag, size = 0x4, scoped, tag = 'scoped memory for tpu_custom_call.1']
    #allocation10 [shape = 'u8[32768]{0}', space=vmem, size = 0x8000, scoped, tag = 'input window, operand 5, single buffered']
    #allocation11 [shape = 'u8[512]{0}', space=vmem, size = 0x400, scoped, tag = 'input window, operand 6, single buffered']
    #allocation12 [shape = 's32[1]{0}', space=sflag, size = 0x4, scoped, tag = 'scoped memory for tpu_custom_call.1']
    #allocation13 [shape = 'u8[512]{0}', space=vmem, size = 0x400, scoped, tag = 'input window, operand 7, single buffered']
    #allocation14 [shape = 'u8[512]{0}', space=vmem, size = 0x400, scoped, tag = 'input window, operand 8, single buffered']
    #allocation15 [shape = 's32[1]{0}', space=sflag, size = 0x4, scoped, tag = 'scoped memory for tpu_custom_call.1']
    #allocation16 [shape = 'u8[131072]{0}', space=vmem, size = 0x20000, scoped, tag = 'input window, operand 9, single buffered']
    #allocation17 [shape = 'u8[131072]{0}', space=vmem, size = 0x20000, scoped, tag = 'input window, operand 11, single buffered']
    #allocation18 [shape = 's32[1]{0}', space=sflag, size = 0x4, scoped, tag = 'scoped memory for tpu_custom_call.1']
    #allocation19 [shape = 'u8[16384]{0}', space=vmem, size = 0x4000, scoped, tag = 'output window, operand 0']
    %18 = vsyncpa [#allocation3], 0
    %s19 = scalar_lea.sflag [#allocation3], 1
    %20 = vsyncpa %s19, 0
    %21 = vsyncpa [#allocation6], 0
    %22 = vsyncpa [#allocation9], 0
    %23 = vsyncpa [#allocation12], 0
    %24 = vsyncpa [#allocation15], 0
    %25 = vsyncpa [#allocation18], 0
    %26 = vsyncpa [#allocation4], 0
    %s27 = scalar_lea.sflag [#allocation4], 1
    %28 = vsyncpa %s27, 0
    loop: start=0, step=1, limit=4
    $region2: #{tpu_custom_call.1} parent=1 // loop_pre_header
      _
    $region3: #{tpu_custom_call.1} parent=1 // loop_header
      %s30 = sphi 0, %s34
      %p31 = scmp.ge.s32.totalorder %s30, 4
      %s40 = sphi 0, %s42
      %s43 = sphi 0, %s40
      %s44 = sphi 0, %s43
      %s60 = sphi 0, %s44
      %s64 = sphi 0, %s64
      %s66 = sphi 0, %s64
      %s67 = sphi 0, %s66
      %s81 = sphi 0, %s67
      %s85 = sphi 0, %s85
      %s87 = sphi 0, %s85
      %s88 = sphi 0, %s87
      %s102 = sphi 0, %s88
      %s106 = sphi 0, %s106
      %s108 = sphi 0, %s106
      %s109 = sphi 0, %s108
      %s123 = sphi 0, %s109
      %s127 = sphi 0, %s127
      %s129 = sphi 0, %s127
      %s130 = sphi 0, %s129
      %s144 = sphi 0, %s130
      %s148 = sphi 0, %s148
      %s150 = sphi 0, %s148
      %s151 = sphi 0, %s150
      %s165 = sphi 0, %s151
      %s169 = sphi 0, %s169
      %s171 = sphi 0, %s169
      %s172 = sphi 0, %s171
      %s186 = sphi 0, %s172
      %s190 = sphi 0, %s190
      %s192 = sphi 0, %s190
      %s193 = sphi 0, %s192
      %s207 = sphi 0, %s193
      %s211 = sphi 0, %s211
      %s213 = sphi 0, %s211
      %s214 = sphi 0, %s213
      %s228 = sphi 0, %s214
      %s232 = sphi 0, %s232
      %s234 = sphi 0, %s232
      %s235 = sphi 0, %s234
      %s249 = sphi 0, %s235
      %s253 = sphi 0, %s253
      %s255 = sphi 0, %s253
      %s256 = sphi 0, %s255
      %s270 = sphi 0, %s256
      %s274 = sphi 0, %s274
      %s276 = sphi 0, %s274
      %s277 = sphi 0, %s276
      %s291 = sphi 0, %s277
      %s295 = sphi 0, %s295
      %s297 = sphi 0, %s295
      %s298 = sphi 0, %s297
      %s312 = sphi 0, %s298
      %s318 = sphi 0, %s320
      %s321 = sphi 0, %s318
      %s322 = sphi 0, %s321
      %s338 = sphi 0, %s322
    $region4: #{tpu_custom_call.1} parent=1 // loop_header_branch
      %33 = sbr.rel (%p31) target = $region8
    $region5: #{tpu_custom_call.1} parent=1 // loop_body
      %s35 = ssub.s32 %s30, 1
      %s36 = ssub.s32 %s30, 2
      %s37 = sadd.s32 %s30, 1
      %s38 = ssub.s32 %s30, %s37
      %p39 = scmp.eq.s32.totalorder %s38, 0
      %s41 = sadd.s32 %s40, 1
      %s42 = scalar_select %p39, %s40, %s41
      %p45 = pneg %p39
      %p46 = scmp.eq.s32.totalorder %s30, 1
      %p47 = por %p45, %p46
      %p48 = scmp.ne.s32.totalorder %s40, %s43
      %p49 = scmp.eq.s32.totalorder %s30, 0
      %p50 = por %p48, %p49
      %p51 = scmp.ne.s32.totalorder %s40, %s43
      %p52 = scmp.eq.s32.totalorder %s35, 1
      %p53 = por %p51, %p52
      %p54 = scmp.ne.s32.totalorder %s43, %s44
      %p55 = scmp.eq.s32.totalorder %s35, 0
      %p56 = por %p54, %p55
      %p57 = scmp.ne.s32.totalorder %s43, %s44
      %p58 = scmp.eq.s32.totalorder %s36, 1
      %p59 = por %p57, %p58
      %p61 = scmp.ne.s32.totalorder %s44, %s60
      %p62 = scmp.eq.s32.totalorder %s36, 0
      %p63 = por %p61, %p62
      %s65 = sadd.s32 %s64, 1
      %p68 = scmp.eq.s32.totalorder %s30, 1
      %p69 = scmp.ne.s32.totalorder %s64, %s66
      %p70 = scmp.eq.s32.totalorder %s30, 0
      %p71 = por %p69, %p70
      %p72 = scmp.ne.s32.totalorder %s64, %s66
      %p73 = scmp.eq.s32.totalorder %s35, 1
      %p74 = por %p72, %p73
      %p75 = scmp.ne.s32.totalorder %s66, %s67
      %p76 = scmp.eq.s32.totalorder %s35, 0
      %p77 = por %p75, %p76
      %p78 = scmp.ne.s32.totalorder %s66, %s67
      %p79 = scmp.eq.s32.totalorder %s36, 1
      %p80 = por %p78, %p79
      %p82 = scmp.ne.s32.totalorder %s67, %s81
      %p83 = scmp.eq.s32.totalorder %s36, 0
      %p84 = por %p82, %p83
      %s86 = sadd.s32 %s85, 1
      %p89 = scmp.eq.s32.totalorder %s30, 1
      %p90 = scmp.ne.s32.totalorder %s85, %s87
      %p91 = scmp.eq.s32.totalorder %s30, 0
      %p92 = por %p90, %p91
      %p93 = scmp.ne.s32.totalorder %s85, %s87
      %p94 = scmp.eq.s32.totalorder %s35, 1
      %p95 = por %p93, %p94
      %p96 = scmp.ne.s32.totalorder %s87, %s88
      %p97 = scmp.eq.s32.totalorder %s35, 0
      %p98 = por %p96, %p97
      %p99 = scmp.ne.s32.totalorder %s87, %s88
      %p100 = scmp.eq.s32.totalorder %s36, 1
      %p101 = por %p99, %p100
      %p103 = scmp.ne.s32.totalorder %s88, %s102
      %p104 = scmp.eq.s32.totalorder %s36, 0
      %p105 = por %p103, %p104
      %s107 = sadd.s32 %s106, 1
      %p110 = scmp.eq.s32.totalorder %s30, 1
      %p111 = scmp.ne.s32.totalorder %s106, %s108
      %p112 = scmp.eq.s32.totalorder %s30, 0
      %p113 = por %p111, %p112
      %p114 = scmp.ne.s32.totalorder %s106, %s108
      %p115 = scmp.eq.s32.totalorder %s35, 1
      %p116 = por %p114, %p115
      %p117 = scmp.ne.s32.totalorder %s108, %s109
      %p118 = scmp.eq.s32.totalorder %s35, 0
      %p119 = por %p117, %p118
      %p120 = scmp.ne.s32.totalorder %s108, %s109
      %p121 = scmp.eq.s32.totalorder %s36, 1
      %p122 = por %p120, %p121
      %p124 = scmp.ne.s32.totalorder %s109, %s123
      %p125 = scmp.eq.s32.totalorder %s36, 0
      %p126 = por %p124, %p125
      %s128 = sadd.s32 %s127, 1
      %p131 = scmp.eq.s32.totalorder %s30, 1
      %p132 = scmp.ne.s32.totalorder %s127, %s129
      %p133 = scmp.eq.s32.totalorder %s30, 0
      %p134 = por %p132, %p133
      %p135 = scmp.ne.s32.totalorder %s127, %s129
      %p136 = scmp.eq.s32.totalorder %s35, 1
      %p137 = por %p135, %p136
      %p138 = scmp.ne.s32.totalorder %s129, %s130
      %p139 = scmp.eq.s32.totalorder %s35, 0
      %p140 = por %p138, %p139
      %p141 = scmp.ne.s32.totalorder %s129, %s130
      %p142 = scmp.eq.s32.totalorder %s36, 1
      %p143 = por %p141, %p142
      %p145 = scmp.ne.s32.totalorder %s130, %s144
      %p146 = scmp.eq.s32.totalorder %s36, 0
      %p147 = por %p145, %p146
      %s149 = sadd.s32 %s148, 1
      %p152 = scmp.eq.s32.totalorder %s30, 1
      %p153 = scmp.ne.s32.totalorder %s148, %s150
      %p154 = scmp.eq.s32.totalorder %s30, 0
      %p155 = por %p153, %p154
      %p156 = scmp.ne.s32.totalorder %s148, %s150
      %p157 = scmp.eq.s32.totalorder %s35, 1
      %p158 = por %p156, %p157
      %p159 = scmp.ne.s32.totalorder %s150, %s151
      %p160 = scmp.eq.s32.totalorder %s35, 0
      %p161 = por %p159, %p160
      %p162 = scmp.ne.s32.totalorder %s150, %s151
      %p163 = scmp.eq.s32.totalorder %s36, 1
      %p164 = por %p162, %p163
      %p166 = scmp.ne.s32.totalorder %s151, %s165
      %p167 = scmp.eq.s32.totalorder %s36, 0
      %p168 = por %p166, %p167
      %s170 = sadd.s32 %s169, 1
      %p173 = scmp.eq.s32.totalorder %s30, 1
      %p174 = scmp.ne.s32.totalorder %s169, %s171
      %p175 = scmp.eq.s32.totalorder %s30, 0
      %p176 = por %p174, %p175
      %p177 = scmp.ne.s32.totalorder %s169, %s171
      %p178 = scmp.eq.s32.totalorder %s35, 1
      %p179 = por %p177, %p178
      %p180 = scmp.ne.s32.totalorder %s171, %s172
      %p181 = scmp.eq.s32.totalorder %s35, 0
      %p182 = por %p180, %p181
      %p183 = scmp.ne.s32.totalorder %s171, %s172
      %p184 = scmp.eq.s32.totalorder %s36, 1
      %p185 = por %p183, %p184
      %p187 = scmp.ne.s32.totalorder %s172, %s186
      %p188 = scmp.eq.s32.totalorder %s36, 0
      %p189 = por %p187, %p188
      %s191 = sadd.s32 %s190, 1
      %p194 = scmp.eq.s32.totalorder %s30, 1
      %p195 = scmp.ne.s32.totalorder %s190, %s192
      %p196 = scmp.eq.s32.totalorder %s30, 0
      %p197 = por %p195, %p196
      %p198 = scmp.ne.s32.totalorder %s190, %s192
      %p199 = scmp.eq.s32.totalorder %s35, 1
      %p200 = por %p198, %p199
      %p201 = scmp.ne.s32.totalorder %s192, %s193
      %p202 = scmp.eq.s32.totalorder %s35, 0
      %p203 = por %p201, %p202
      %p204 = scmp.ne.s32.totalorder %s192, %s193
      %p205 = scmp.eq.s32.totalorder %s36, 1
      %p206 = por %p204, %p205
      %p208 = scmp.ne.s32.totalorder %s193, %s207
      %p209 = scmp.eq.s32.totalorder %s36, 0
      %p210 = por %p208, %p209
      %s212 = sadd.s32 %s211, 1
      %p215 = scmp.eq.s32.totalorder %s30, 1
      %p216 = scmp.ne.s32.totalorder %s211, %s213
      %p217 = scmp.eq.s32.totalorder %s30, 0
      %p218 = por %p216, %p217
      %p219 = scmp.ne.s32.totalorder %s211, %s213
      %p220 = scmp.eq.s32.totalorder %s35, 1
      %p221 = por %p219, %p220
      %p222 = scmp.ne.s32.totalorder %s213, %s214
      %p223 = scmp.eq.s32.totalorder %s35, 0
      %p224 = por %p222, %p223
      %p225 = scmp.ne.s32.totalorder %s213, %s214
      %p226 = scmp.eq.s32.totalorder %s36, 1
      %p227 = por %p225, %p226
      %p229 = scmp.ne.s32.totalorder %s214, %s228
      %p230 = scmp.eq.s32.totalorder %s36, 0
      %p231 = por %p229, %p230
      %s233 = sadd.s32 %s232, 1
      %p236 = scmp.eq.s32.totalorder %s30, 1
      %p237 = scmp.ne.s32.totalorder %s232, %s234
      %p238 = scmp.eq.s32.totalorder %s30, 0
      %p239 = por %p237, %p238
      %p240 = scmp.ne.s32.totalorder %s232, %s234
      %p241 = scmp.eq.s32.totalorder %s35, 1
      %p242 = por %p240, %p241
      %p243 = scmp.ne.s32.totalorder %s234, %s235
      %p244 = scmp.eq.s32.totalorder %s35, 0
      %p245 = por %p243, %p244
      %p246 = scmp.ne.s32.totalorder %s234, %s235
      %p247 = scmp.eq.s32.totalorder %s36, 1
      %p248 = por %p246, %p247
      %p250 = scmp.ne.s32.totalorder %s235, %s249
      %p251 = scmp.eq.s32.totalorder %s36, 0
      %p252 = por %p250, %p251
      %s254 = sadd.s32 %s253, 1
      %p257 = scmp.eq.s32.totalorder %s30, 1
      %p258 = scmp.ne.s32.totalorder %s253, %s255
      %p259 = scmp.eq.s32.totalorder %s30, 0
      %p260 = por %p258, %p259
      %p261 = scmp.ne.s32.totalorder %s253, %s255
      %p262 = scmp.eq.s32.totalorder %s35, 1
      %p263 = por %p261, %p262
      %p264 = scmp.ne.s32.totalorder %s255, %s256
      %p265 = scmp.eq.s32.totalorder %s35, 0
      %p266 = por %p264, %p265
      %p267 = scmp.ne.s32.totalorder %s255, %s256
      %p268 = scmp.eq.s32.totalorder %s36, 1
      %p269 = por %p267, %p268
      %p271 = scmp.ne.s32.totalorder %s256, %s270
      %p272 = scmp.eq.s32.totalorder %s36, 0
      %p273 = por %p271, %p272
      %s275 = sadd.s32 %s274, 1
      %p278 = scmp.eq.s32.totalorder %s30, 1
      %p279 = scmp.ne.s32.totalorder %s274, %s276
      %p280 = scmp.eq.s32.totalorder %s30, 0
      %p281 = por %p279, %p280
      %p282 = scmp.ne.s32.totalorder %s274, %s276
      %p283 = scmp.eq.s32.totalorder %s35, 1
      %p284 = por %p282, %p283
      %p285 = scmp.ne.s32.totalorder %s276, %s277
      %p286 = scmp.eq.s32.totalorder %s35, 0
      %p287 = por %p285, %p286
      %p288 = scmp.ne.s32.totalorder %s276, %s277
      %p289 = scmp.eq.s32.totalorder %s36, 1
      %p290 = por %p288, %p289
      %p292 = scmp.ne.s32.totalorder %s277, %s291
      %p293 = scmp.eq.s32.totalorder %s36, 0
      %p294 = por %p292, %p293
      %s296 = sadd.s32 %s295, 1
      %p299 = scmp.eq.s32.totalorder %s30, 1
      %p300 = scmp.ne.s32.totalorder %s295, %s297
      %p301 = scmp.eq.s32.totalorder %s30, 0
      %p302 = por %p300, %p301
      %p303 = scmp.ne.s32.totalorder %s295, %s297
      %p304 = scmp.eq.s32.totalorder %s35, 1
      %p305 = por %p303, %p304
      %p306 = scmp.ne.s32.totalorder %s297, %s298
      %p307 = scmp.eq.s32.totalorder %s35, 0
      %p308 = por %p306, %p307
      %p309 = scmp.ne.s32.totalorder %s297, %s298
      %p310 = scmp.eq.s32.totalorder %s36, 1
      %p311 = por %p309, %p310
      %p313 = scmp.ne.s32.totalorder %s298, %s312
      %p314 = scmp.eq.s32.totalorder %s36, 0
      %p315 = por %p313, %p314
      %s316 = ssub.s32 %s30, %s37
      %p317 = scmp.eq.s32.totalorder %s316, 0
      %s319 = sadd.s32 %s318, 1
      %s320 = scalar_select %p317, %s318, %s319
      %p323 = pneg %p317
      %p324 = scmp.eq.s32.totalorder %s30, 1
      %p325 = por %p323, %p324
      %p326 = scmp.ne.s32.totalorder %s318, %s321
      %p327 = scmp.eq.s32.totalorder %s30, 0
      %p328 = por %p326, %p327
      %p329 = scmp.ne.s32.totalorder %s318, %s321
      %p330 = scmp.eq.s32.totalorder %s35, 1
      %p331 = por %p329, %p330
      %p332 = scmp.ne.s32.totalorder %s321, %s322
      %p333 = scmp.eq.s32.totalorder %s35, 0
      %p334 = por %p332, %p333
      %p335 = scmp.ne.s32.totalorder %s321, %s322
      %p336 = scmp.eq.s32.totalorder %s36, 1
      %p337 = por %p335, %p336
      %p339 = scmp.ne.s32.totalorder %s322, %s338
      %p340 = scmp.eq.s32.totalorder %s36, 0
      %p341 = por %p339, %p340
      %p342 = scmp.le.s32.totalorder 1, %s30
      %p343 = scmp.lt.s32.totalorder %s30, 3
      %p344 = pnand %p342, %p343
      %p345 = pneg %p344
      // Predicated region
      $region9: #{tpu_custom_call.1} parent=5 // pred_check
        _
      $region10: #{tpu_custom_call.1} parent=5 // pred_check_branch
        %347 = sbr.rel (%p344) target = $region12
      $region11: #{tpu_custom_call.1} parent=5 // pred_region
        %s348 = ssub.s32 %s30, 1
        // Predicated region
        $region13: #{tpu_custom_call.1} parent=11 // pred_check
          %p349 = pneg %p77
        $region14: #{tpu_custom_call.1} parent=11 // pred_check_branch
          %351 = sbr.rel (%p349) target = $region16
        $region15: #{tpu_custom_call.1} parent=11 // pred_region
          %353 = vsyncadd [#allocation6], 0
          %s355 = sshll.u32 %s1, 4
          %s356 = int_to_ptr.hbm [resolvable:$true] %s355
          %s357 = sshll.u32 [#allocation5], 4
          %s358 = int_to_ptr.vmem [resolvable:$true] %s357
          %360 = dma.hbm_to_vmem [thread:$0]  %s356, 16, %s358, [#allocation6]
        $region16: #{tpu_custom_call.1} parent=11 // pred_fallthru
          _
        // Predicated region
        $region17: #{tpu_custom_call.1} parent=11 // pred_check
          %p361 = pneg %p98
        $region18: #{tpu_custom_call.1} parent=11 // pred_check_branch
          %363 = sbr.rel (%p361) target = $region20
        $region19: #{tpu_custom_call.1} parent=11 // pred_region
          %365 = vsyncadd [#allocation6], 0
          %s367 = sshll.u32 %s2, 4
          %s368 = int_to_ptr.hbm [resolvable:$true] %s367
          %s369 = sshll.u32 [#allocation7], 4
          %s370 = int_to_ptr.vmem [resolvable:$true] %s369
          %372 = dma.hbm_to_vmem [thread:$0]  %s368, 16, %s370, [#allocation6]
        $region20: #{tpu_custom_call.1} parent=11 // pred_fallthru
          _
        // Predicated region
        $region21: #{tpu_custom_call.1} parent=11 // pred_check
          %p373 = pneg %p119
        $region22: #{tpu_custom_call.1} parent=11 // pred_check_branch
          %375 = sbr.rel (%p373) target = $region24
        $region23: #{tpu_custom_call.1} parent=11 // pred_region
          %377 = vsyncadd [#allocation9], 0
          %s378 = sshll.u32 %s3, 4
          %s379 = int_to_ptr.hbm [resolvable:$true] %s378
          %s380 = sshll.u32 [#allocation8], 4
          %s381 = int_to_ptr.vmem [resolvable:$true] %s380
          %386 = dma.hbm_to_vmem [thread:$0]  %s379, 3072, %s381, [#allocation9], 192, 192, 12
        $region24: #{tpu_custom_call.1} parent=11 // pred_fallthru
          _
        // Predicated region
        $region25: #{tpu_custom_call.1} parent=11 // pred_check
          %p387 = pneg %p140
        $region26: #{tpu_custom_call.1} parent=11 // pred_check_branch
          %389 = sbr.rel (%p387) target = $region28
        $region27: #{tpu_custom_call.1} parent=11 // pred_region
          _
        $region28: #{tpu_custom_call.1} parent=11 // pred_fallthru
          _
        // Predicated region
        $region29: #{tpu_custom_call.1} parent=11 // pred_check
          %p390 = pneg %p161
        $region30: #{tpu_custom_call.1} parent=11 // pred_check_branch
          %392 = sbr.rel (%p390) target = $region32
        $region31: #{tpu_custom_call.1} parent=11 // pred_region
          %394 = vsyncadd [#allocation9], 0
          %s395 = sshll.u32 %s5, 4
          %s396 = int_to_ptr.hbm [resolvable:$true] %s395
          %s397 = sshll.u32 [#allocation10], 4
          %s398 = int_to_ptr.vmem [resolvable:$true] %s397
          %403 = dma.hbm_to_vmem [thread:$0]  %s396, 1024, %s398, [#allocation9], 64, 64, 4
        $region32: #{tpu_custom_call.1} parent=11 // pred_fallthru
          _
        // Predicated region
        $region33: #{tpu_custom_call.1} parent=11 // pred_check
          %p404 = pneg %p182
        $region34: #{tpu_custom_call.1} parent=11 // pred_check_branch
          %406 = sbr.rel (%p404) target = $region36
        $region35: #{tpu_custom_call.1} parent=11 // pred_region
          %408 = vsyncadd [#allocation12], 0
          %s410 = sshll.u32 %s6, 4
          %s411 = int_to_ptr.hbm [resolvable:$true] %s410
          %s412 = sshll.u32 [#allocation11], 4
          %s413 = int_to_ptr.vmem [resolvable:$true] %s412
          %415 = dma.hbm_to_vmem [thread:$0]  %s411, 16, %s413, [#allocation12]
        $region36: #{tpu_custom_call.1} parent=11 // pred_fallthru
          _
        // Predicated region
        $region37: #{tpu_custom_call.1} parent=11 // pred_check
          %p416 = pneg %p203
        $region38: #{tpu_custom_call.1} parent=11 // pred_check_branch
          %418 = sbr.rel (%p416) target = $region40
        $region39: #{tpu_custom_call.1} parent=11 // pred_region
          %420 = vsyncadd [#allocation12], 0
          %s422 = sshll.u32 %s7, 4
          %s423 = int_to_ptr.hbm [resolvable:$true] %s422
          %s424 = sshll.u32 [#allocation13], 4
          %s425 = int_to_ptr.vmem [resolvable:$true] %s424
          %427 = dma.hbm_to_vmem [thread:$0]  %s423, 16, %s425, [#allocation12]
        $region40: #{tpu_custom_call.1} parent=11 // pred_fallthru
          _
        // Predicated region
        $region41: #{tpu_custom_call.1} parent=11 // pred_check
          %p428 = pneg %p224
        $region42: #{tpu_custom_call.1} parent=11 // pred_check_branch
          %430 = sbr.rel (%p428) target = $region44
        $region43: #{tpu_custom_call.1} parent=11 // pred_region
          %432 = vsyncadd [#allocation15], 0
          %s434 = sshll.u32 %s8, 4
          %s435 = int_to_ptr.hbm [resolvable:$true] %s434
          %s436 = sshll.u32 [#allocation14], 4
          %s437 = int_to_ptr.vmem [resolvable:$true] %s436
          %439 = dma.hbm_to_vmem [thread:$0]  %s435, 16, %s437, [#allocation15]
        $region44: #{tpu_custom_call.1} parent=11 // pred_fallthru
          _
        // Predicated region
        $region45: #{tpu_custom_call.1} parent=11 // pred_check
          %p440 = pneg %p245
        $region46: #{tpu_custom_call.1} parent=11 // pred_check_branch
          %442 = sbr.rel (%p440) target = $region48
        $region47: #{tpu_custom_call.1} parent=11 // pred_region
          %444 = vsyncadd [#allocation15], 0
          %s445 = sshll.u32 %s9, 4
          %s446 = int_to_ptr.hbm [resolvable:$true] %s445
          %s447 = sshll.u32 [#allocation16], 4
          %s448 = int_to_ptr.vmem [resolvable:$true] %s447
          %453 = dma.hbm_to_vmem [thread:$0]  %s446, 4096, %s448, [#allocation15], 256, 256, 16
        $region48: #{tpu_custom_call.1} parent=11 // pred_fallthru
          _
        // Predicated region
        $region49: #{tpu_custom_call.1} parent=11 // pred_check
          %p454 = pneg %p266
        $region50: #{tpu_custom_call.1} parent=11 // pred_check_branch
          %456 = sbr.rel (%p454) target = $region52
        $region51: #{tpu_custom_call.1} parent=11 // pred_region
          _
        $region52: #{tpu_custom_call.1} parent=11 // pred_fallthru
          _
        // Predicated region
        $region53: #{tpu_custom_call.1} parent=11 // pred_check
          %p457 = pneg %p287
        $region54: #{tpu_custom_call.1} parent=11 // pred_check_branch
          %459 = sbr.rel (%p457) target = $region56
        $region55: #{tpu_custom_call.1} parent=11 // pred_region
          %461 = vsyncadd [#allocation18], 0
          %s462 = sshll.u32 %s11, 4
          %s463 = int_to_ptr.hbm [resolvable:$true] %s462
          %s464 = sshll.u32 [#allocation17], 4
          %s465 = int_to_ptr.vmem [resolvable:$true] %s464
          %470 = dma.hbm_to_vmem [thread:$0]  %s463, 4096, %s465, [#allocation18], 64, 64, 4
        $region56: #{tpu_custom_call.1} parent=11 // pred_fallthru
          _
        // Predicated region
        $region57: #{tpu_custom_call.1} parent=11 // pred_check
          %p471 = pneg %p308
        $region58: #{tpu_custom_call.1} parent=11 // pred_check_branch
          %473 = sbr.rel (%p471) target = $region60
        $region59: #{tpu_custom_call.1} parent=11 // pred_region
          _
        $region60: #{tpu_custom_call.1} parent=11 // pred_fallthru
          _
      $region12: #{tpu_custom_call.1} parent=5 // pred_fallthru
        _
      %p474 = scmp.lt.s32.totalorder %s30, 2
      // Predicated region
      $region61: #{tpu_custom_call.1} parent=5 // pred_check
        %p475 = pneg %p474
      $region62: #{tpu_custom_call.1} parent=5 // pred_check_branch
        %477 = sbr.rel (%p475) target = $region64
      $region63: #{tpu_custom_call.1} parent=5 // pred_region
        // Predicated region
        $region65: #{tpu_custom_call.1} parent=63 // pred_check
          %p478 = pneg %p50
        $region66: #{tpu_custom_call.1} parent=63 // pred_check_branch
          %480 = sbr.rel (%p478) target = $region68
        $region67: #{tpu_custom_call.1} parent=63 // pred_region
          %s481 = sand.u32 %s40, 1
          %s482 = scalar_lea.sflag [#allocation3], %s481
          %s483 = sand.u32 %s40, 1
          %s484 = smul.addr %s483, 16
          %s485 = scalar_lea.vmem [#allocation2], %s484
          %487 = vsyncadd %s482, 0
          %s488 = smul.addr %s30, 2
          %s489 = smul.addr %s488, 8
          %s490 = scalar_lea.hbm %s0, %s489
          %s491 = sshll.u32 %s490, 4
          %s492 = int_to_ptr.hbm [resolvable:$true] %s491
          %s493 = sshll.u32 %s485, 4
          %s494 = int_to_ptr.vmem [resolvable:$true] %s493
          %499 = dma.hbm_to_vmem [thread:$0]  %s492, 256, %s494, %s482, 128, 128, 8
        $region68: #{tpu_custom_call.1} parent=63 // pred_fallthru
          _
      $region64: #{tpu_custom_call.1} parent=5 // pred_fallthru
        _
      %p500 = scmp.le.s32.totalorder 1, %s30
      %p501 = scmp.lt.s32.totalorder %s30, 3
      %p502 = pnand %p500, %p501
      %p503 = pneg %p502
      // Predicated region
      $region69: #{tpu_custom_call.1} parent=5 // pred_check
        _
      $region70: #{tpu_custom_call.1} parent=5 // pred_check_branch
        %505 = sbr.rel (%p502) target = $region72
      $region71: #{tpu_custom_call.1} parent=5 // pred_region
        %s506 = ssub.s32 %s30, 1
        %s507 = sand.u32 %s43, 1
        %s508 = scalar_lea.sflag [#allocation3], %s507
        %s509 = sand.u32 %s43, 1
        %s510 = smul.addr %s509, 16
        %s511 = scalar_lea.vmem [#allocation2], %s510
        // Predicated region
        $region73: #{tpu_custom_call.1} parent=71 // pred_check
          %p512 = pneg %p56
        $region74: #{tpu_custom_call.1} parent=71 // pred_check_branch
          %514 = sbr.rel (%p512) target = $region76
        $region75: #{tpu_custom_call.1} parent=71 // pred_region
          %516 = dma.done %s508, 256
        $region76: #{tpu_custom_call.1} parent=71 // pred_fallthru
          _
        // Predicated region
        $region77: #{tpu_custom_call.1} parent=71 // pred_check
          %p517 = pneg %p77
        $region78: #{tpu_custom_call.1} parent=71 // pred_check_branch
          %519 = sbr.rel (%p517) target = $region80
        $region79: #{tpu_custom_call.1} parent=71 // pred_region
          %521 = dma.done [#allocation6], 16
        $region80: #{tpu_custom_call.1} parent=71 // pred_fallthru
          _
        // Predicated region
        $region81: #{tpu_custom_call.1} parent=71 // pred_check
          %p522 = pneg %p98
        $region82: #{tpu_custom_call.1} parent=71 // pred_check_branch
          %524 = sbr.rel (%p522) target = $region84
        $region83: #{tpu_custom_call.1} parent=71 // pred_region
          %526 = dma.done [#allocation6], 16
        $region84: #{tpu_custom_call.1} parent=71 // pred_fallthru
          _
        // Predicated region
        $region85: #{tpu_custom_call.1} parent=71 // pred_check
          %p527 = pneg %p119
        $region86: #{tpu_custom_call.1} parent=71 // pred_check_branch
          %529 = sbr.rel (%p527) target = $region88
        $region87: #{tpu_custom_call.1} parent=71 // pred_region
          %531 = dma.done [#allocation9], 3072
        $region88: #{tpu_custom_call.1} parent=71 // pred_fallthru
          _
        // Predicated region
        $region89: #{tpu_custom_call.1} parent=71 // pred_check
          %p532 = pneg %p161
        $region90: #{tpu_custom_call.1} parent=71 // pred_check_branch
          %534 = sbr.rel (%p532) target = $region92
        $region91: #{tpu_custom_call.1} parent=71 // pred_region
          %536 = dma.done [#allocation9], 1024
        $region92: #{tpu_custom_call.1} parent=71 // pred_fallthru
          _
        // Predicated region
        $region93: #{tpu_custom_call.1} parent=71 // pred_check
          %p537 = pneg %p182
        $region94: #{tpu_custom_call.1} parent=71 // pred_check_branch
          %539 = sbr.rel (%p537) target = $region96
        $region95: #{tpu_custom_call.1} parent=71 // pred_region
          %541 = dma.done [#allocation12], 16
        $region96: #{tpu_custom_call.1} parent=71 // pred_fallthru
          _
        // Predicated region
        $region97: #{tpu_custom_call.1} parent=71 // pred_check
          %p542 = pneg %p203
        $region98: #{tpu_custom_call.1} parent=71 // pred_check_branch
          %544 = sbr.rel (%p542) target = $region100
        $region99: #{tpu_custom_call.1} parent=71 // pred_region
          %546 = dma.done [#allocation12], 16
        $region100: #{tpu_custom_call.1} parent=71 // pred_fallthru
          _
        // Predicated region
        $region101: #{tpu_custom_call.1} parent=71 // pred_check
          %p547 = pneg %p224
        $region102: #{tpu_custom_call.1} parent=71 // pred_check_branch
          %549 = sbr.rel (%p547) target = $region104
        $region103: #{tpu_custom_call.1} parent=71 // pred_region
          %551 = dma.done [#allocation15], 16
        $region104: #{tpu_custom_call.1} parent=71 // pred_fallthru
          _
        // Predicated region
        $region105: #{tpu_custom_call.1} parent=71 // pred_check
          %p552 = pneg %p245
        $region106: #{tpu_custom_call.1} parent=71 // pred_check_branch
          %554 = sbr.rel (%p552) target = $region108
        $region107: #{tpu_custom_call.1} parent=71 // pred_region
          %556 = dma.done [#allocation15], 4096
        $region108: #{tpu_custom_call.1} parent=71 // pred_fallthru
          _
        // Predicated region
        $region109: #{tpu_custom_call.1} parent=71 // pred_check
          %p557 = pneg %p287
        $region110: #{tpu_custom_call.1} parent=71 // pred_check_branch
          %559 = sbr.rel (%p557) target = $region112
        $region111: #{tpu_custom_call.1} parent=71 // pred_region
          %561 = dma.done [#allocation18], 4096
        $region112: #{tpu_custom_call.1} parent=71 // pred_fallthru
          _
        %s562 = sand.u32 %s43, 1
        %s563 = scalar_lea.sflag [#allocation3], %s562
        %s564 = sand.u32 %s43, 1
        %s565 = smul.addr %s564, 16
        %s566 = scalar_lea.vmem [#allocation2], %s565
        %p567 = pneg %p56
        %p568 = pneg %p53
        %p569 = pneg %p77
        %p570 = pneg %p74
        %p571 = pneg %p98
        %p572 = pneg %p95
        %p573 = pneg %p119
        %p574 = pneg %p116
        %p575 = pneg %p140
        %p576 = pneg %p137
        %p577 = pneg %p161
        %p578 = pneg %p158
        %p579 = pneg %p182
        %p580 = pneg %p179
        %p581 = pneg %p203
        %p582 = pneg %p200
        %p583 = pneg %p224
        %p584 = pneg %p221
        %p585 = pneg %p245
        %p586 = pneg %p242
        %p587 = pneg %p266
        %p588 = pneg %p263
        %p589 = pneg %p287
        %p590 = pneg %p284
        %p591 = pneg %p308
        %p592 = pneg %p305
        %p593 = pneg %p334
        %p594 = pneg %p331
        %s595 = sand.u32 %s321, 1
        %s596 = scalar_lea.sflag [#allocation4], %s595
        %s597 = sand.u32 %s321, 1
        %s598 = smul.addr %s597, 16
        %s599 = scalar_lea.vmem [#allocation19], %s598
        %v601 = vld [vmem:[%s511] sm:$0xff]
        %v602 = vld [vmem:[%s511 + $0x8] sm:$0xff]
        %v603 = vld [vmem:[#allocation5] sm:$0x1]
        %v604 = vld [vmem:[#allocation7] sm:$0x1]
        %v605 = vld [vmem:[#allocation13] sm:$0x1]
        %v606 = vld [vmem:[#allocation14] sm:$0x1]
        %v607 = vld [vmem:[%s4] sm:$0x7]
        %v608 = vld [vmem:[#allocation11] sm:$0x1]
        %v609 = vld [vmem:[%s10] sm:$0xf]
        %v610 = vld [vmem:[%s12] sm:$0x1]
        %v611 = vld [vmem:[#allocation8] sm:$0xff]
        %v612 = vld [vmem:[#allocation8 + $0x8] sm:$0xf]
        %v613 = vld [vmem:[#allocation8 + $0xc] sm:$0xff]
        %v614 = vld [vmem:[#allocation8 + $0x14] sm:$0xf]
        %v615 = vld [vmem:[#allocation8 + $0x18] sm:$0xff]
        %v616 = vld [vmem:[#allocation8 + $0x20] sm:$0xf]
        %v617 = vld [vmem:[#allocation8 + $0x24] sm:$0xff]
        %v618 = vld [vmem:[#allocation8 + $0x2c] sm:$0xf]
        %v619 = vld [vmem:[#allocation8 + $0x30] sm:$0xff]
        %v620 = vld [vmem:[#allocation8 + $0x38] sm:$0xf]
        %v621 = vld [vmem:[#allocation8 + $0x3c] sm:$0xff]
        %v622 = vld [vmem:[#allocation8 + $0x44] sm:$0xf]
        %v623 = vld [vmem:[#allocation8 + $0x48] sm:$0xff]
        %v624 = vld [vmem:[#allocation8 + $0x50] sm:$0xf]
        %v625 = vld [vmem:[#allocation8 + $0x54] sm:$0xff]
        %v626 = vld [vmem:[#allocation8 + $0x5c] sm:$0xf]
        %v627 = vld [vmem:[#allocation8 + $0x60] sm:$0xff]
        %v628 = vld [vmem:[#allocation8 + $0x68] sm:$0xf]
        %v629 = vld [vmem:[#allocation8 + $0x6c] sm:$0xff]
        %v630 = vld [vmem:[#allocation8 + $0x74] sm:$0xf]
        %v631 = vld [vmem:[#allocation8 + $0x78] sm:$0xff]
        %v632 = vld [vmem:[#allocation8 + $0x80] sm:$0xf]
        %v633 = vld [vmem:[#allocation8 + $0x84] sm:$0xff]
        %v634 = vld [vmem:[#allocation8 + $0x8c] sm:$0xf]
        %v635 = vld [vmem:[#allocation8 + $0x90] sm:$0xff]
        %v636 = vld [vmem:[#allocation8 + $0x98] sm:$0xf]
        %v637 = vld [vmem:[#allocation8 + $0x9c] sm:$0xff]
        %v638 = vld [vmem:[#allocation8 + $0xa4] sm:$0xf]
        %v639 = vld [vmem:[#allocation8 + $0xa8] sm:$0xff]
        %v640 = vld [vmem:[#allocation8 + $0xb0] sm:$0xf]
        %v641 = vld [vmem:[#allocation8 + $0xb4] sm:$0xff]
        %v642 = vld [vmem:[#allocation8 + $0xbc] sm:$0xf]
        %v643 = vld [vmem:[#allocation10] sm:$0xf]
        %v644 = vld [vmem:[#allocation10 + $0x4] sm:$0xf]
        %v645 = vld [vmem:[#allocation10 + $0x8] sm:$0xf]
        %v646 = vld [vmem:[#allocation10 + $0xc] sm:$0xf]
        %v647 = vld [vmem:[#allocation10 + $0x10] sm:$0xf]
        %v648 = vld [vmem:[#allocation10 + $0x14] sm:$0xf]
        %v649 = vld [vmem:[#allocation10 + $0x18] sm:$0xf]
        %v650 = vld [vmem:[#allocation10 + $0x1c] sm:$0xf]
        %v651 = vld [vmem:[#allocation10 + $0x20] sm:$0xf]
        %v652 = vld [vmem:[#allocation10 + $0x24] sm:$0xf]
        %v653 = vld [vmem:[#allocation10 + $0x28] sm:$0xf]
        %v654 = vld [vmem:[#allocation10 + $0x2c] sm:$0xf]
        %v655 = vld [vmem:[#allocation10 + $0x30] sm:$0xf]
        %v656 = vld [vmem:[#allocation10 + $0x34] sm:$0xf]
        %v657 = vld [vmem:[#allocation10 + $0x38] sm:$0xf]
        %v658 = vld [vmem:[#allocation10 + $0x3c] sm:$0xf]
        %v659 = vld [vmem:[#allocation16] sm:$0xff]
        %v660 = vld [vmem:[#allocation16 + $0x8] sm:$0xff]
        %v661 = vld [vmem:[#allocation16 + $0x10] sm:$0xff]
        %v662 = vld [vmem:[#allocation16 + $0x18] sm:$0xff]
        %v663 = vld [vmem:[#allocation16 + $0x20] sm:$0xff]
        %v664 = vld [vmem:[#allocation16 + $0x28] sm:$0xff]
        %v665 = vld [vmem:[#allocation16 + $0x30] sm:$0xff]
        %v666 = vld [vmem:[#allocation16 + $0x38] sm:$0xff]
        %v667 = vld [vmem:[#allocation16 + $0x40] sm:$0xff]
        %v668 = vld [vmem:[#allocation16 + $0x48] sm:$0xff]
        %v669 = vld [vmem:[#allocation16 + $0x50] sm:$0xff]
        %v670 = vld [vmem:[#allocation16 + $0x58] sm:$0xff]
        %v671 = vld [vmem:[#allocation16 + $0x60] sm:$0xff]
        %v672 = vld [vmem:[#allocation16 + $0x68] sm:$0xff]
        %v673 = vld [vmem:[#allocation16 + $0x70] sm:$0xff]
        %v674 = vld [vmem:[#allocation16 + $0x78] sm:$0xff]
        %v675 = vld [vmem:[#allocation16 + $0x80] sm:$0xff]
        %v676 = vld [vmem:[#allocation16 + $0x88] sm:$0xff]
        %v677 = vld [vmem:[#allocation16 + $0x90] sm:$0xff]
        %v678 = vld [vmem:[#allocation16 + $0x98] sm:$0xff]
        %v679 = vld [vmem:[#allocation16 + $0xa0] sm:$0xff]
        %v680 = vld [vmem:[#allocation16 + $0xa8] sm:$0xff]
        %v681 = vld [vmem:[#allocation16 + $0xb0] sm:$0xff]
        %v682 = vld [vmem:[#allocation16 + $0xb8] sm:$0xff]
        %v683 = vld [vmem:[#allocation16 + $0xc0] sm:$0xff]
        %v684 = vld [vmem:[#allocation16 + $0xc8] sm:$0xff]
        %v685 = vld [vmem:[#allocation16 + $0xd0] sm:$0xff]
        %v686 = vld [vmem:[#allocation16 + $0xd8] sm:$0xff]
        %v687 = vld [vmem:[#allocation16 + $0xe0] sm:$0xff]
        %v688 = vld [vmem:[#allocation16 + $0xe8] sm:$0xff]
        %v689 = vld [vmem:[#allocation16 + $0xf0] sm:$0xff]
        %v690 = vld [vmem:[#allocation16 + $0xf8] sm:$0xff]
        %v691 = vld [vmem:[#allocation17] sm:$0xf]
        %v692 = vld [vmem:[#allocation17 + $0x4] sm:$0xf]
        %v693 = vld [vmem:[#allocation17 + $0x8] sm:$0xf]
        %v694 = vld [vmem:[#allocation17 + $0xc] sm:$0xf]
        %v695 = vld [vmem:[#allocation17 + $0x10] sm:$0xf]
        %v696 = vld [vmem:[#allocation17 + $0x14] sm:$0xf]
        %v697 = vld [vmem:[#allocation17 + $0x18] sm:$0xf]
        %v698 = vld [vmem:[#allocation17 + $0x1c] sm:$0xf]
        %v699 = vld [vmem:[#allocation17 + $0x20] sm:$0xf]
        %v700 = vld [vmem:[#allocation17 + $0x24] sm:$0xf]
        %v701 = vld [vmem:[#allocation17 + $0x28] sm:$0xf]
        %v702 = vld [vmem:[#allocation17 + $0x2c] sm:$0xf]
        %v703 = vld [vmem:[#allocation17 + $0x30] sm:$0xf]
        %v704 = vld [vmem:[#allocation17 + $0x34] sm:$0xf]
        %v705 = vld [vmem:[#allocation17 + $0x38] sm:$0xf]
        %v706 = vld [vmem:[#allocation17 + $0x3c] sm:$0xf]
        %v707 = vld [vmem:[#allocation17 + $0x40] sm:$0xf]
        %v708 = vld [vmem:[#allocation17 + $0x44] sm:$0xf]
        %v709 = vld [vmem:[#allocation17 + $0x48] sm:$0xf]
        %v710 = vld [vmem:[#allocation17 + $0x4c] sm:$0xf]
        %v711 = vld [vmem:[#allocation17 + $0x50] sm:$0xf]
        %v712 = vld [vmem:[#allocation17 + $0x54] sm:$0xf]
        %v713 = vld [vmem:[#allocation17 + $0x58] sm:$0xf]
        %v714 = vld [vmem:[#allocation17 + $0x5c] sm:$0xf]
        %v715 = vld [vmem:[#allocation17 + $0x60] sm:$0xf]
        %v716 = vld [vmem:[#allocation17 + $0x64] sm:$0xf]
        %v717 = vld [vmem:[#allocation17 + $0x68] sm:$0xf]
        %v718 = vld [vmem:[#allocation17 + $0x6c] sm:$0xf]
        %v719 = vld [vmem:[#allocation17 + $0x70] sm:$0xf]
        %v720 = vld [vmem:[#allocation17 + $0x74] sm:$0xf]
        %v721 = vld [vmem:[#allocation17 + $0x78] sm:$0xf]
        %v722 = vld [vmem:[#allocation17 + $0x7c] sm:$0xf]
        %v723 = vld [vmem:[#allocation17 + $0x80] sm:$0xf]
        %v724 = vld [vmem:[#allocation17 + $0x84] sm:$0xf]
        %v725 = vld [vmem:[#allocation17 + $0x88] sm:$0xf]
        %v726 = vld [vmem:[#allocation17 + $0x8c] sm:$0xf]
        %v727 = vld [vmem:[#allocation17 + $0x90] sm:$0xf]
        %v728 = vld [vmem:[#allocation17 + $0x94] sm:$0xf]
        %v729 = vld [vmem:[#allocation17 + $0x98] sm:$0xf]
        %v730 = vld [vmem:[#allocation17 + $0x9c] sm:$0xf]
        %v731 = vld [vmem:[#allocation17 + $0xa0] sm:$0xf]
        %v732 = vld [vmem:[#allocation17 + $0xa4] sm:$0xf]
        %v733 = vld [vmem:[#allocation17 + $0xa8] sm:$0xf]
        %v734 = vld [vmem:[#allocation17 + $0xac] sm:$0xf]
        %v735 = vld [vmem:[#allocation17 + $0xb0] sm:$0xf]
        %v736 = vld [vmem:[#allocation17 + $0xb4] sm:$0xf]
        %v737 = vld [vmem:[#allocation17 + $0xb8] sm:$0xf]
        %v738 = vld [vmem:[#allocation17 + $0xbc] sm:$0xf]
        %v739 = vld [vmem:[#allocation17 + $0xc0] sm:$0xf]
        %v740 = vld [vmem:[#allocation17 + $0xc4] sm:$0xf]
        %v741 = vld [vmem:[#allocation17 + $0xc8] sm:$0xf]
        %v742 = vld [vmem:[#allocation17 + $0xcc] sm:$0xf]
        %v743 = vld [vmem:[#allocation17 + $0xd0] sm:$0xf]
        %v744 = vld [vmem:[#allocation17 + $0xd4] sm:$0xf]
        %v745 = vld [vmem:[#allocation17 + $0xd8] sm:$0xf]
        %v746 = vld [vmem:[#allocation17 + $0xdc] sm:$0xf]
        %v747 = vld [vmem:[#allocation17 + $0xe0] sm:$0xf]
        %v748 = vld [vmem:[#allocation17 + $0xe4] sm:$0xf]
        %v749 = vld [vmem:[#allocation17 + $0xe8] sm:$0xf]
        %v750 = vld [vmem:[#allocation17 + $0xec] sm:$0xf]
        %v751 = vld [vmem:[#allocation17 + $0xf0] sm:$0xf]
        %v752 = vld [vmem:[#allocation17 + $0xf4] sm:$0xf]
        %v753 = vld [vmem:[#allocation17 + $0xf8] sm:$0xf]
        %v754 = vld [vmem:[#allocation17 + $0xfc] sm:$0xf]
        %755 = vadd.xlane.f32.xlu0 %v601
        %v756 = vpop.xlane.xlu0 %755
        %757 = vadd.xlane.f32.xlu0 %v602
        %v758 = vpop.xlane.xlu0 %757
        %v759 = vrcp.pop 128.0
        %v760 = vmul.f32 128.0, %v759
        %v761 = vsub.f32 1.0, %v760
        %v762 = vmul.f32 %v759, %v761
        %v763 = vadd.f32 %v759, %v762
        %vm764 = vweird.f32 %v759
        %v765 = vsel %vm764, %v759, %v763
        %v766 = vmul.f32 %v756, %v765
        %v767 = vmul.f32 %v758, %v765
        %v768 = vsub.f32 %v601, %v766
        %v769 = vsub.f32 %v602, %v767
        %v770 = vmul.f32 %v768, %v768
        %v771 = vmul.f32 %v769, %v769
        %772 = vadd.xlane.f32.xlu0 %v770
        %v773 = vpop.xlane.xlu0 %772
        %774 = vadd.xlane.f32.xlu0 %v771
        %v775 = vpop.xlane.xlu0 %774
        %v776 = vmul.f32 %v773, %v765
        %v777 = vmul.f32 %v775, %v765
        %v778 = vadd.f32 %v776, 1e-05
        %v779 = vadd.f32 %v777, 1e-05
        %v780 = vrsqrt.pop %v778
        %v781 = vmul.f32 %v780, %v778
        %v782 = vmul.f32 %v781, %v780
        %v783 = vmul.f32 0.5, %v782
        %v784 = vsub.f32 1.5, %v783
        %v785 = vmul.f32 %v780, %v784
        %vm786 = vweird.f32 %v778
        %vm787 = vweird.f32 %v780
        %vm788 = vmor %vm786, %vm787
        %v789 = vsel %vm788, %v780, %v785
        %v790 = vrsqrt.pop %v779
        %v791 = vmul.f32 %v790, %v779
        %v792 = vmul.f32 %v791, %v790
        %v793 = vmul.f32 0.5, %v792
        %v794 = vsub.f32 1.5, %v793
        %v795 = vmul.f32 %v790, %v794
        %vm796 = vweird.f32 %v779
        %vm797 = vweird.f32 %v790
        %vm798 = vmor %vm796, %vm797
        %v799 = vsel %vm798, %v790, %v795
        %v800 = vmul.f32 %v768, %v789
        %v801 = vmul.f32 %v769, %v799
        %v803 = vperm.slane %v603, 0
        %v805 = vmul.f32 %v800, %v803
        %v806 = vmul.f32 %v801, %v803
        %v808 = vperm.slane %v604, 0
        %v810 = vadd.f32 %v805, %v808
        %v811 = vadd.f32 %v806, %v808
        %v812 = vpack.c.bf16 %v811, %v810
        %v814 = vperm.slane %v607, 0
        %v815 = vperm.slane %v607, 1
        %v816 = vperm.slane %v607, 2
        %v852 = vunpack.c.l.b16 %v611
        %v853 = vunpack.c.h.b16 %v611
        %v854 = vunpack.c.l.b16 %v612
        %v855 = vunpack.c.l.b16 %v613
        %v856 = vunpack.c.h.b16 %v613
        %v857 = vunpack.c.l.b16 %v614
        %v858 = vunpack.c.l.b16 %v615
        %v859 = vunpack.c.h.b16 %v615
        %v860 = vunpack.c.l.b16 %v616
        %v861 = vunpack.c.l.b16 %v617
        %v862 = vunpack.c.h.b16 %v617
        %v863 = vunpack.c.l.b16 %v618
        %v864 = vunpack.c.l.b16 %v619
        %v865 = vunpack.c.h.b16 %v619
        %v866 = vunpack.c.l.b16 %v620
        %v867 = vunpack.c.l.b16 %v621
        %v868 = vunpack.c.h.b16 %v621
        %v869 = vunpack.c.l.b16 %v622
        %v870 = vunpack.c.l.b16 %v623
        %v871 = vunpack.c.h.b16 %v623
        %v872 = vunpack.c.l.b16 %v624
        %v873 = vunpack.c.l.b16 %v625
        %v874 = vunpack.c.h.b16 %v625
        %v875 = vunpack.c.l.b16 %v626
        %v876 = vunpack.c.l.b16 %v627
        %v877 = vunpack.c.h.b16 %v627
        %v878 = vunpack.c.l.b16 %v628
        %v879 = vunpack.c.l.b16 %v629
        %v880 = vunpack.c.h.b16 %v629
        %v881 = vunpack.c.l.b16 %v630
        %v882 = vunpack.c.l.b16 %v631
        %v883 = vunpack.c.h.b16 %v631
        %v884 = vunpack.c.l.b16 %v632
        %v885 = vunpack.c.l.b16 %v633
        %v886 = vunpack.c.h.b16 %v633
        %v887 = vunpack.c.l.b16 %v634
        %v888 = vunpack.c.l.b16 %v635
        %v889 = vunpack.c.h.b16 %v635
        %v890 = vunpack.c.l.b16 %v636
        %v891 = vunpack.c.l.b16 %v637
        %v892 = vunpack.c.h.b16 %v637
        %v893 = vunpack.c.l.b16 %v638
        %v894 = vunpack.c.l.b16 %v639
        %v895 = vunpack.c.h.b16 %v639
        %v896 = vunpack.c.l.b16 %v640
        %v897 = vunpack.c.l.b16 %v641
        %v898 = vunpack.c.h.b16 %v641
        %v899 = vunpack.c.l.b16 %v642
        %v900 = vpack.c.b16 %v855, %v852
        %v901 = vpack.c.b16 %v856, %v853
        %v902 = vpack.c.b16 %v857, %v854
        %v903 = vpack.c.b16 %v861, %v858
        %v904 = vpack.c.b16 %v862, %v859
        %v905 = vpack.c.b16 %v863, %v860
        %v906 = vpack.c.b16 %v867, %v864
        %v907 = vpack.c.b16 %v868, %v865
        %v908 = vpack.c.b16 %v869, %v866
        %v909 = vpack.c.b16 %v873, %v870
        %v910 = vpack.c.b16 %v874, %v871
        %v911 = vpack.c.b16 %v875, %v872
        %v912 = vpack.c.b16 %v879, %v876
        %v913 = vpack.c.b16 %v880, %v877
        %v914 = vpack.c.b16 %v881, %v878
        %v915 = vpack.c.b16 %v885, %v882
        %v916 = vpack.c.b16 %v886, %v883
        %v917 = vpack.c.b16 %v887, %v884
        %v918 = vpack.c.b16 %v891, %v888
        %v919 = vpack.c.b16 %v892, %v889
        %v920 = vpack.c.b16 %v893, %v890
        %v921 = vpack.c.b16 %v897, %v894
        %v922 = vpack.c.b16 %v898, %v895
        %v923 = vpack.c.b16 %v899, %v896
        %948 = vmatpush.bf16.msra.mxu0 %v921
        %949 = vmatpush.bf16.msra.mxu0 %v918
        %950 = vmatpush.bf16.msra.mxu0 %v915
        %951 = vmatpush.bf16.msra.mxu0 %v912
        %952 = vmatpush.bf16.msra.mxu0 %v909
        %953 = vmatpush.bf16.msra.mxu0 %v906
        %954 = vmatpush.bf16.msra.mxu0 %v903
        %955 = vmatpush.bf16.msra.mxu0 %v900
        %956 = vmatmul.bf16.gmra.mxu0 %v812
        %v957 = vpop.f32.mrf.mxu0
        %v958 = vadd.f32 %v814, %v957
        %v959 = vpop.f32.mrf.mxu0
        %v960 = vadd.f32 %v814, %v959
        %961 = vdwg.mxu0
        %962 = vmatpush.bf16.msra.mxu0 %v922
        %963 = vmatpush.bf16.msra.mxu0 %v919
        %964 = vmatpush.bf16.msra.mxu0 %v916
        %965 = vmatpush.bf16.msra.mxu0 %v913
        %966 = vmatpush.bf16.msra.mxu0 %v910
        %967 = vmatpush.bf16.msra.mxu0 %v907
        %968 = vmatpush.bf16.msra.mxu0 %v904
        %969 = vmatpush.bf16.msra.mxu0 %v901
        %970 = vmatmul.bf16.gmra.mxu0 %v812
        %v971 = vpop.f32.mrf.mxu0
        %v972 = vadd.f32 %v815, %v971
        %v973 = vpop.f32.mrf.mxu0
        %v974 = vadd.f32 %v815, %v973
        %975 = vdwg.mxu0
        %976 = vmatpush.bf16.msra.mxu0 %v923
        %977 = vmatpush.bf16.msra.mxu0 %v920
        %978 = vmatpush.bf16.msra.mxu0 %v917
        %979 = vmatpush.bf16.msra.mxu0 %v914
        %980 = vmatpush.bf16.msra.mxu0 %v911
        %981 = vmatpush.bf16.msra.mxu0 %v908
        %982 = vmatpush.bf16.msra.mxu0 %v905
        %983 = vmatpush.bf16.msra.mxu0 %v902
        %984 = vmatmul.bf16.gmra.mxu0 %v812
        %v985 = vpop.f32.mrf.mxu0
        %v986 = vadd.f32 %v816, %v985
        %v987 = vpop.f32.mrf.mxu0
        %v988 = vadd.f32 %v816, %v987
        %989 = vdwg.mxu0
        %v990 = vmul.f32 %v958, 0.17677669
        %v991 = vmul.f32 %v960, 0.17677669
        %994 = vrot.lane.b32.xlu0 %v990, 96
        %v995 = vpop.permute.xlu0 %994
        %996 = vrot.lane.b32.xlu0 %v991, 96
        %v997 = vpop.permute.xlu0 %996
        %1000 = vrot.lane.b32.xlu0 %v990, 64
        %v1001 = vpop.permute.xlu0 %1000
        %1002 = vrot.lane.b32.xlu0 %v991, 64
        %v1003 = vpop.permute.xlu0 %1002
        %1006 = vrot.lane.b32.xlu0 %v990, 32
        %v1007 = vpop.permute.xlu0 %1006
        %1008 = vrot.lane.b32.xlu0 %v991, 32
        %v1009 = vpop.permute.xlu0 %1008
        %v1012 = vpack.c.bf16 %v990, %v990
        %v1013 = vpack.c.bf16 %v991, %v991
        %v1014 = vpack.c.bf16 %v995, %v995
        %v1015 = vpack.c.bf16 %v997, %v997
        %v1016 = vpack.c.bf16 %v1001, %v1001
        %v1017 = vpack.c.bf16 %v1003, %v1003
        %v1018 = vpack.c.bf16 %v1007, %v1007
        %v1019 = vpack.c.bf16 %v1009, %v1009
        %1022 = vrot.lane.b32.xlu0 %v972, 96
        %v1023 = vpop.permute.xlu0 %1022
        %1024 = vrot.lane.b32.xlu0 %v974, 96
        %v1025 = vpop.permute.xlu0 %1024
        %1028 = vrot.lane.b32.xlu0 %v972, 64
        %v1029 = vpop.permute.xlu0 %1028
        %1030 = vrot.lane.b32.xlu0 %v974, 64
        %v1031 = vpop.permute.xlu0 %1030
        %1034 = vrot.lane.b32.xlu0 %v972, 32
        %v1035 = vpop.permute.xlu0 %1034
        %1036 = vrot.lane.b32.xlu0 %v974, 32
        %v1037 = vpop.permute.xlu0 %1036
        %v1040 = vpack.c.bf16 %v972, %v972
        %v1041 = vpack.c.bf16 %v974, %v974
        %v1042 = vpack.c.bf16 %v1023, %v1023
        %v1043 = vpack.c.bf16 %v1025, %v1025
        %v1044 = vpack.c.bf16 %v1029, %v1029
        %v1045 = vpack.c.bf16 %v1031, %v1031
        %v1046 = vpack.c.bf16 %v1035, %v1035
        %v1047 = vpack.c.bf16 %v1037, %v1037
        %1050 = vrot.lane.b32.xlu0 %v986, 96
        %v1051 = vpop.permute.xlu0 %1050
        %1052 = vrot.lane.b32.xlu0 %v988, 96
        %v1053 = vpop.permute.xlu0 %1052
        %1056 = vrot.lane.b32.xlu0 %v986, 64
        %v1057 = vpop.permute.xlu0 %1056
        %1058 = vrot.lane.b32.xlu0 %v988, 64
        %v1059 = vpop.permute.xlu0 %1058
        %1062 = vrot.lane.b32.xlu0 %v986, 32
        %v1063 = vpop.permute.xlu0 %1062
        %1064 = vrot.lane.b32.xlu0 %v988, 32
        %v1065 = vpop.permute.xlu0 %1064
        %v1068 = vpack.c.bf16 %v986, %v986
        %v1069 = vpack.c.bf16 %v988, %v988
        %v1070 = vpack.c.bf16 %v1051, %v1051
        %v1071 = vpack.c.bf16 %v1053, %v1053
        %v1072 = vpack.c.bf16 %v1057, %v1057
        %v1073 = vpack.c.bf16 %v1059, %v1059
        %v1074 = vpack.c.bf16 %v1063, %v1063
        %v1075 = vpack.c.bf16 %v1065, %v1065
        %v1078 = vunpack.c.l.b16 %v1012
        %v1079 = vunpack.c.l.b16 %v1013
        %v1080 = vpack.c.b16 %v1079, %v1078
        %v1083 = vunpack.c.l.b16 %v1040
        %v1084 = vunpack.c.l.b16 %v1041
        %v1085 = vpack.c.b16 %v1084, %v1083
        %vm1086 = vcmask 261120
        %v1088 = vsel %vm1086, %v1080, 0
        %v1091 = vsel %vm1086, %v1085, 0
        %1093 = vmatpush.bf16.xpose.msra.mxu0 0
        %1094 = vmatpush.bf16.xpose.msra.mxu0 0
        %1095 = vmatpush.bf16.xpose.msra.mxu0 0
        %1096 = vmatpush.bf16.xpose.msra.mxu0 0
        %1097 = vmatpush.bf16.xpose.msra.mxu0 0
        %1098 = vmatpush.bf16.xpose.msra.mxu0 0
        %1099 = vmatpush.bf16.xpose.msra.mxu0 0
        %1100 = vmatpush.bf16.xpose.msra.mxu0 %v1091
        %1101 = vmatmul.bf16.gmra.mxu0 %v1088
        %v1102 = vpop.f32.mrf.mxu0
        %v1103 = vadd.f32 0.0, %v1102
        %v1104 = vpop.f32.mrf.mxu0
        %v1105 = vadd.f32 0.0, %v1104
        %1106 = vdwg.mxu0
        %v1109 = vunpack.c.l.b16 %v1014
        %v1110 = vunpack.c.l.b16 %v1015
        %v1111 = vpack.c.b16 %v1110, %v1109
        %v1114 = vunpack.c.l.b16 %v1042
        %v1115 = vunpack.c.l.b16 %v1043
        %v1116 = vpack.c.b16 %v1115, %v1114
        %v1118 = vsel %vm1086, %v1111, 0
        %v1121 = vsel %vm1086, %v1116, 0
        %1123 = vmatpush.bf16.xpose.msra.mxu0 0
        %1124 = vmatpush.bf16.xpose.msra.mxu0 0
        %1125 = vmatpush.bf16.xpose.msra.mxu0 0
        %1126 = vmatpush.bf16.xpose.msra.mxu0 0
        %1127 = vmatpush.bf16.xpose.msra.mxu0 0
        %1128 = vmatpush.bf16.xpose.msra.mxu0 0
        %1129 = vmatpush.bf16.xpose.msra.mxu0 0
        %1130 = vmatpush.bf16.xpose.msra.mxu0 %v1121
        %1131 = vmatmul.bf16.gmra.mxu0 %v1118
        %v1132 = vpop.f32.mrf.mxu0
        %v1133 = vadd.f32 0.0, %v1132
        %v1134 = vpop.f32.mrf.mxu0
        %v1135 = vadd.f32 0.0, %v1134
        %1136 = vdwg.mxu0
        %v1139 = vunpack.c.l.b16 %v1016
        %v1140 = vunpack.c.l.b16 %v1017
        %v1141 = vpack.c.b16 %v1140, %v1139
        %v1144 = vunpack.c.l.b16 %v1044
        %v1145 = vunpack.c.l.b16 %v1045
        %v1146 = vpack.c.b16 %v1145, %v1144
        %v1148 = vsel %vm1086, %v1141, 0
        %v1151 = vsel %vm1086, %v1146, 0
        %1153 = vmatpush.bf16.xpose.msra.mxu0 0
        %1154 = vmatpush.bf16.xpose.msra.mxu0 0
        %1155 = vmatpush.bf16.xpose.msra.mxu0 0
        %1156 = vmatpush.bf16.xpose.msra.mxu0 0
        %1157 = vmatpush.bf16.xpose.msra.mxu0 0
        %1158 = vmatpush.bf16.xpose.msra.mxu0 0
        %1159 = vmatpush.bf16.xpose.msra.mxu0 0
        %1160 = vmatpush.bf16.xpose.msra.mxu0 %v1151
        %1161 = vmatmul.bf16.gmra.mxu0 %v1148
        %v1162 = vpop.f32.mrf.mxu0
        %v1163 = vadd.f32 0.0, %v1162
        %v1164 = vpop.f32.mrf.mxu0
        %v1165 = vadd.f32 0.0, %v1164
        %1166 = vdwg.mxu0
        %v1169 = vunpack.c.l.b16 %v1018
        %v1170 = vunpack.c.l.b16 %v1019
        %v1171 = vpack.c.b16 %v1170, %v1169
        %v1174 = vunpack.c.l.b16 %v1046
        %v1175 = vunpack.c.l.b16 %v1047
        %v1176 = vpack.c.b16 %v1175, %v1174
        %v1178 = vsel %vm1086, %v1171, 0
        %v1181 = vsel %vm1086, %v1176, 0
        %1183 = vmatpush.bf16.xpose.msra.mxu0 0
        %1184 = vmatpush.bf16.xpose.msra.mxu0 0
        %1185 = vmatpush.bf16.xpose.msra.mxu0 0
        %1186 = vmatpush.bf16.xpose.msra.mxu0 0
        %1187 = vmatpush.bf16.xpose.msra.mxu0 0
        %1188 = vmatpush.bf16.xpose.msra.mxu0 0
        %1189 = vmatpush.bf16.xpose.msra.mxu0 0
        %1190 = vmatpush.bf16.xpose.msra.mxu0 %v1181
        %1191 = vmatmul.bf16.gmra.mxu0 %v1178
        %v1192 = vpop.f32.mrf.mxu0
        %v1193 = vadd.f32 0.0, %v1192
        %v1194 = vpop.f32.mrf.mxu0
        %v1195 = vadd.f32 0.0, %v1194
        %1196 = vdwg.mxu0
        %vm1197 = vcmask 130048
        %v1198 = vsel %vm1197, %v1103, -inf
        %1199 = vmax.xlane.f32.xlu0 %v1198
        %v1200 = vpop.xlane.xlu0 %1199
        %v1201 = vsel %vm1197, %v1105, -inf
        %1202 = vmax.xlane.f32.xlu0 %v1201
        %v1203 = vpop.xlane.xlu0 %1202
        %v1204 = vsel %vm1197, %v1133, -inf
        %1205 = vmax.xlane.f32.xlu0 %v1204
        %v1206 = vpop.xlane.xlu0 %1205
        %v1207 = vsel %vm1197, %v1135, -inf
        %1208 = vmax.xlane.f32.xlu0 %v1207
        %v1209 = vpop.xlane.xlu0 %1208
        %v1210 = vsel %vm1197, %v1163, -inf
        %1211 = vmax.xlane.f32.xlu0 %v1210
        %v1212 = vpop.xlane.xlu0 %1211
        %v1213 = vsel %vm1197, %v1165, -inf
        %1214 = vmax.xlane.f32.xlu0 %v1213
        %v1215 = vpop.xlane.xlu0 %1214
        %v1216 = vsel %vm1197, %v1193, -inf
        %1217 = vmax.xlane.f32.xlu0 %v1216
        %v1218 = vpop.xlane.xlu0 %1217
        %v1219 = vsel %vm1197, %v1195, -inf
        %1220 = vmax.xlane.f32.xlu0 %v1219
        %v1221 = vpop.xlane.xlu0 %1220
        %v1222 = vsub.f32 %v1103, %v1200
        %v1223 = vsub.f32 %v1105, %v1203
        %v1224 = vsub.f32 %v1133, %v1206
        %v1225 = vsub.f32 %v1135, %v1209
        %v1226 = vsub.f32 %v1163, %v1212
        %v1227 = vsub.f32 %v1165, %v1215
        %v1228 = vsub.f32 %v1193, %v1218
        %v1229 = vsub.f32 %v1195, %v1221
        %v1230 = vmul.f32 %v1222, 1.442695
        %v1231 = vpow.pop %v1230
        %v1232 = vmul.f32 %v1223, 1.442695
        %v1233 = vpow.pop %v1232
        %v1234 = vmul.f32 %v1224, 1.442695
        %v1235 = vpow.pop %v1234
        %v1236 = vmul.f32 %v1225, 1.442695
        %v1237 = vpow.pop %v1236
        %v1238 = vmul.f32 %v1226, 1.442695
        %v1239 = vpow.pop %v1238
        %v1240 = vmul.f32 %v1227, 1.442695
        %v1241 = vpow.pop %v1240
        %v1242 = vmul.f32 %v1228, 1.442695
        %v1243 = vpow.pop %v1242
        %v1244 = vmul.f32 %v1229, 1.442695
        %v1245 = vpow.pop %v1244
        %v1246 = vsel %vm1197, %v1231, 0.0
        %1247 = vadd.xlane.f32.xlu0 %v1246
        %v1248 = vpop.xlane.xlu0 %1247
        %v1249 = vsel %vm1197, %v1233, 0.0
        %1250 = vadd.xlane.f32.xlu0 %v1249
        %v1251 = vpop.xlane.xlu0 %1250
        %v1252 = vsel %vm1197, %v1235, 0.0
        %1253 = vadd.xlane.f32.xlu0 %v1252
        %v1254 = vpop.xlane.xlu0 %1253
        %v1255 = vsel %vm1197, %v1237, 0.0
        %1256 = vadd.xlane.f32.xlu0 %v1255
        %v1257 = vpop.xlane.xlu0 %1256
        %v1258 = vsel %vm1197, %v1239, 0.0
        %1259 = vadd.xlane.f32.xlu0 %v1258
        %v1260 = vpop.xlane.xlu0 %1259
        %v1261 = vsel %vm1197, %v1241, 0.0
        %1262 = vadd.xlane.f32.xlu0 %v1261
        %v1263 = vpop.xlane.xlu0 %1262
        %v1264 = vsel %vm1197, %v1243, 0.0
        %1265 = vadd.xlane.f32.xlu0 %v1264
        %v1266 = vpop.xlane.xlu0 %1265
        %v1267 = vsel %vm1197, %v1245, 0.0
        %1268 = vadd.xlane.f32.xlu0 %v1267
        %v1269 = vpop.xlane.xlu0 %1268
        %v1270 = vpack.c.bf16 %v1231, %v1231
        %v1271 = vpack.c.bf16 %v1233, %v1233
        %v1272 = vpack.c.bf16 %v1235, %v1235
        %v1273 = vpack.c.bf16 %v1237, %v1237
        %v1274 = vpack.c.bf16 %v1239, %v1239
        %v1275 = vpack.c.bf16 %v1241, %v1241
        %v1276 = vpack.c.bf16 %v1243, %v1243
        %v1277 = vpack.c.bf16 %v1245, %v1245
        %v1280 = vunpack.c.l.b16 %v1270
        %v1281 = vunpack.c.l.b16 %v1271
        %v1282 = vpack.c.b16 %v1281, %v1280
        %v1285 = vunpack.c.l.b16 %v1068
        %v1286 = vunpack.c.l.b16 %v1069
        %v1287 = vpack.c.b16 %v1286, %v1285
        %v1290 = vsel %vm1197, %v1282, 0
        %1292 = vmatpush.bf16.msra.mxu0 0
        %1293 = vmatpush.bf16.msra.mxu0 0
        %1294 = vmatpush.bf16.msra.mxu0 0
        %1295 = vmatpush.bf16.msra.mxu0 0
        %1296 = vmatpush.bf16.msra.mxu0 0
        %1297 = vmatpush.bf16.msra.mxu0 0
        %1298 = vmatpush.bf16.msra.mxu0 0
        %1299 = vmatpush.bf16.msra.mxu0 %v1287
        %1300 = vmatmul.bf16.gmra.mxu0 %v1290
        %v1301 = vpop.f32.mrf.mxu0
        %v1302 = vadd.f32 0.0, %v1301
        %v1303 = vpop.f32.mrf.mxu0
        %v1304 = vadd.f32 0.0, %v1303
        %1305 = vdwg.mxu0
        %v1308 = vunpack.c.l.b16 %v1272
        %v1309 = vunpack.c.l.b16 %v1273
        %v1310 = vpack.c.b16 %v1309, %v1308
        %v1313 = vunpack.c.l.b16 %v1070
        %v1314 = vunpack.c.l.b16 %v1071
        %v1315 = vpack.c.b16 %v1314, %v1313
        %v1318 = vsel %vm1197, %v1310, 0
        %1320 = vmatpush.bf16.msra.mxu0 0
        %1321 = vmatpush.bf16.msra.mxu0 0
        %1322 = vmatpush.bf16.msra.mxu0 0
        %1323 = vmatpush.bf16.msra.mxu0 0
        %1324 = vmatpush.bf16.msra.mxu0 0
        %1325 = vmatpush.bf16.msra.mxu0 0
        %1326 = vmatpush.bf16.msra.mxu0 0
        %1327 = vmatpush.bf16.msra.mxu0 %v1315
        %1328 = vmatmul.bf16.gmra.mxu0 %v1318
        %v1329 = vpop.f32.mrf.mxu0
        %v1330 = vadd.f32 0.0, %v1329
        %v1331 = vpop.f32.mrf.mxu0
        %v1332 = vadd.f32 0.0, %v1331
        %1333 = vdwg.mxu0
        %v1336 = vunpack.c.l.b16 %v1274
        %v1337 = vunpack.c.l.b16 %v1275
        %v1338 = vpack.c.b16 %v1337, %v1336
        %v1341 = vunpack.c.l.b16 %v1072
        %v1342 = vunpack.c.l.b16 %v1073
        %v1343 = vpack.c.b16 %v1342, %v1341
        %v1346 = vsel %vm1197, %v1338, 0
        %1348 = vmatpush.bf16.msra.mxu0 0
        %1349 = vmatpush.bf16.msra.mxu0 0
        %1350 = vmatpush.bf16.msra.mxu0 0
        %1351 = vmatpush.bf16.msra.mxu0 0
        %1352 = vmatpush.bf16.msra.mxu0 0
        %1353 = vmatpush.bf16.msra.mxu0 0
        %1354 = vmatpush.bf16.msra.mxu0 0
        %1355 = vmatpush.bf16.msra.mxu0 %v1343
        %1356 = vmatmul.bf16.gmra.mxu0 %v1346
        %v1357 = vpop.f32.mrf.mxu0
        %v1358 = vadd.f32 0.0, %v1357
        %v1359 = vpop.f32.mrf.mxu0
        %v1360 = vadd.f32 0.0, %v1359
        %1361 = vdwg.mxu0
        %v1364 = vunpack.c.l.b16 %v1276
        %v1365 = vunpack.c.l.b16 %v1277
        %v1366 = vpack.c.b16 %v1365, %v1364
        %v1369 = vunpack.c.l.b16 %v1074
        %v1370 = vunpack.c.l.b16 %v1075
        %v1371 = vpack.c.b16 %v1370, %v1369
        %v1374 = vsel %vm1197, %v1366, 0
        %1376 = vmatpush.bf16.msra.mxu0 0
        %1377 = vmatpush.bf16.msra.mxu0 0
        %1378 = vmatpush.bf16.msra.mxu0 0
        %1379 = vmatpush.bf16.msra.mxu0 0
        %1380 = vmatpush.bf16.msra.mxu0 0
        %1381 = vmatpush.bf16.msra.mxu0 0
        %1382 = vmatpush.bf16.msra.mxu0 0
        %1383 = vmatpush.bf16.msra.mxu0 %v1371
        %1384 = vmatmul.bf16.gmra.mxu0 %v1374
        %v1385 = vpop.f32.mrf.mxu0
        %v1386 = vadd.f32 0.0, %v1385
        %v1387 = vpop.f32.mrf.mxu0
        %v1388 = vadd.f32 0.0, %v1387
        %1389 = vdwg.mxu0
        %v1390 = vrcp.pop %v1248
        %v1391 = vrcp.pop %v1251
        %v1392 = vrcp.pop %v1254
        %v1393 = vrcp.pop %v1257
        %v1394 = vrcp.pop %v1260
        %v1395 = vrcp.pop %v1263
        %v1396 = vrcp.pop %v1266
        %v1397 = vrcp.pop %v1269
        %v1398 = vmul.f32 %v1302, %v1390
        %v1399 = vmul.f32 %v1304, %v1391
        %v1400 = vmul.f32 %v1330, %v1392
        %v1401 = vmul.f32 %v1332, %v1393
        %v1402 = vmul.f32 %v1358, %v1394
        %v1403 = vmul.f32 %v1360, %v1395
        %v1404 = vmul.f32 %v1386, %v1396
        %v1405 = vmul.f32 %v1388, %v1397
        %v1406 = vpack.c.bf16 %v1398, %v1398
        %v1407 = vpack.c.bf16 %v1399, %v1399
        %v1408 = vpack.c.bf16 %v1400, %v1400
        %v1409 = vpack.c.bf16 %v1401, %v1401
        %v1410 = vpack.c.bf16 %v1402, %v1402
        %v1411 = vpack.c.bf16 %v1403, %v1403
        %v1412 = vpack.c.bf16 %v1404, %v1404
        %v1413 = vpack.c.bf16 %v1405, %v1405
        %v1416 = vunpack.c.l.b16 %v1406
        %v1417 = vunpack.c.l.b16 %v1407
        %v1418 = vpack.c.b16 %v1417, %v1416
        %v1423 = vunpack.c.l.b16 %v643
        %v1424 = vunpack.c.l.b16 %v644
        %v1425 = vunpack.c.l.b16 %v645
        %v1426 = vunpack.c.l.b16 %v646
        %v1427 = vpack.c.b16 %v1424, %v1423
        %v1428 = vpack.c.b16 %v1426, %v1425
        %v1432 = vsel %vm1086, %v1418, 0
        %1434 = vmatpush.bf16.msra.mxu0 0
        %1435 = vmatpush.bf16.msra.mxu0 0
        %1436 = vmatpush.bf16.msra.mxu0 0
        %1437 = vmatpush.bf16.msra.mxu0 0
        %1438 = vmatpush.bf16.msra.mxu0 0
        %1439 = vmatpush.bf16.msra.mxu0 0
        %1440 = vmatpush.bf16.msra.mxu0 %v1428
        %1441 = vmatpush.bf16.msra.mxu0 %v1427
        %1442 = vmatmul.bf16.gmra.mxu0 %v1432
        %v1443 = vpop.f32.mrf.mxu0
        %v1444 = vadd.f32 0.0, %v1443
        %v1445 = vpop.f32.mrf.mxu0
        %v1446 = vadd.f32 0.0, %v1445
        %1447 = vdwg.mxu0
        %v1450 = vunpack.c.l.b16 %v1408
        %v1451 = vunpack.c.l.b16 %v1409
        %v1452 = vpack.c.b16 %v1451, %v1450
        %v1457 = vunpack.c.l.b16 %v647
        %v1458 = vunpack.c.l.b16 %v648
        %v1459 = vunpack.c.l.b16 %v649
        %v1460 = vunpack.c.l.b16 %v650
        %v1461 = vpack.c.b16 %v1458, %v1457
        %v1462 = vpack.c.b16 %v1460, %v1459
        %v1466 = vsel %vm1086, %v1452, 0
        %1468 = vmatpush.bf16.msra.mxu0 0
        %1469 = vmatpush.bf16.msra.mxu0 0
        %1470 = vmatpush.bf16.msra.mxu0 0
        %1471 = vmatpush.bf16.msra.mxu0 0
        %1472 = vmatpush.bf16.msra.mxu0 0
        %1473 = vmatpush.bf16.msra.mxu0 0
        %1474 = vmatpush.bf16.msra.mxu0 %v1462
        %1475 = vmatpush.bf16.msra.mxu0 %v1461
        %1476 = vmatmul.bf16.gmra.mxu0 %v1466
        %v1477 = vpop.f32.mrf.mxu0
        %v1478 = vadd.f32 0.0, %v1477
        %v1479 = vpop.f32.mrf.mxu0
        %v1480 = vadd.f32 0.0, %v1479
        %1481 = vdwg.mxu0
        %v1484 = vunpack.c.l.b16 %v1410
        %v1485 = vunpack.c.l.b16 %v1411
        %v1486 = vpack.c.b16 %v1485, %v1484
        %v1491 = vunpack.c.l.b16 %v651
        %v1492 = vunpack.c.l.b16 %v652
        %v1493 = vunpack.c.l.b16 %v653
        %v1494 = vunpack.c.l.b16 %v654
        %v1495 = vpack.c.b16 %v1492, %v1491
        %v1496 = vpack.c.b16 %v1494, %v1493
        %v1500 = vsel %vm1086, %v1486, 0
        %1502 = vmatpush.bf16.msra.mxu0 0
        %1503 = vmatpush.bf16.msra.mxu0 0
        %1504 = vmatpush.bf16.msra.mxu0 0
        %1505 = vmatpush.bf16.msra.mxu0 0
        %1506 = vmatpush.bf16.msra.mxu0 0
        %1507 = vmatpush.bf16.msra.mxu0 0
        %1508 = vmatpush.bf16.msra.mxu0 %v1496
        %1509 = vmatpush.bf16.msra.mxu0 %v1495
        %1510 = vmatmul.bf16.gmra.mxu0 %v1500
        %v1511 = vpop.f32.mrf.mxu0
        %v1512 = vadd.f32 0.0, %v1511
        %v1513 = vpop.f32.mrf.mxu0
        %v1514 = vadd.f32 0.0, %v1513
        %1515 = vdwg.mxu0
        %v1518 = vunpack.c.l.b16 %v1412
        %v1519 = vunpack.c.l.b16 %v1413
        %v1520 = vpack.c.b16 %v1519, %v1518
        %v1525 = vunpack.c.l.b16 %v655
        %v1526 = vunpack.c.l.b16 %v656
        %v1527 = vunpack.c.l.b16 %v657
        %v1528 = vunpack.c.l.b16 %v658
        %v1529 = vpack.c.b16 %v1526, %v1525
        %v1530 = vpack.c.b16 %v1528, %v1527
        %v1534 = vsel %vm1086, %v1520, 0
        %1536 = vmatpush.bf16.msra.mxu0 0
        %1537 = vmatpush.bf16.msra.mxu0 0
        %1538 = vmatpush.bf16.msra.mxu0 0
        %1539 = vmatpush.bf16.msra.mxu0 0
        %1540 = vmatpush.bf16.msra.mxu0 0
        %1541 = vmatpush.bf16.msra.mxu0 0
        %1542 = vmatpush.bf16.msra.mxu0 %v1530
        %1543 = vmatpush.bf16.msra.mxu0 %v1529
        %1544 = vmatmul.bf16.gmra.mxu0 %v1534
        %v1545 = vpop.f32.mrf.mxu0
        %v1546 = vadd.f32 0.0, %v1545
        %v1547 = vpop.f32.mrf.mxu0
        %v1548 = vadd.f32 0.0, %v1547
        %1549 = vdwg.mxu0
        %v1550 = vadd.f32 %v1444, %v1478
        %v1551 = vadd.f32 %v1550, %v1512
        %v1552 = vadd.f32 %v1551, %v1546
        %v1553 = vadd.f32 %v1446, %v1480
        %v1554 = vadd.f32 %v1553, %v1514
        %v1555 = vadd.f32 %v1554, %v1548
        %v1557 = vperm.slane %v608, 0
        %v1559 = vadd.f32 %v1552, %v1557
        %v1560 = vadd.f32 %v1555, %v1557
        %v1561 = vadd.f32 %v601, %v1559
        %v1562 = vadd.f32 %v602, %v1560
        %1563 = vadd.xlane.f32.xlu0 %v1561
        %v1564 = vpop.xlane.xlu0 %1563
        %1565 = vadd.xlane.f32.xlu0 %v1562
        %v1566 = vpop.xlane.xlu0 %1565
        %v1567 = vmul.f32 %v1564, %v765
        %v1568 = vmul.f32 %v1566, %v765
        %v1569 = vsub.f32 %v1561, %v1567
        %v1570 = vsub.f32 %v1562, %v1568
        %v1571 = vmul.f32 %v1569, %v1569
        %v1572 = vmul.f32 %v1570, %v1570
        %1573 = vadd.xlane.f32.xlu0 %v1571
        %v1574 = vpop.xlane.xlu0 %1573
        %1575 = vadd.xlane.f32.xlu0 %v1572
        %v1576 = vpop.xlane.xlu0 %1575
        %v1577 = vmul.f32 %v1574, %v765
        %v1578 = vmul.f32 %v1576, %v765
        %v1579 = vadd.f32 %v1577, 1e-05
        %v1580 = vadd.f32 %v1578, 1e-05
        %v1581 = vrsqrt.pop %v1579
        %v1582 = vmul.f32 %v1581, %v1579
        %v1583 = vmul.f32 %v1582, %v1581
        %v1584 = vmul.f32 0.5, %v1583
        %v1585 = vsub.f32 1.5, %v1584
        %v1586 = vmul.f32 %v1581, %v1585
        %vm1587 = vweird.f32 %v1579
        %vm1588 = vweird.f32 %v1581
        %vm1589 = vmor %vm1587, %vm1588
        %v1590 = vsel %vm1589, %v1581, %v1586
        %v1591 = vrsqrt.pop %v1580
        %v1592 = vmul.f32 %v1591, %v1580
        %v1593 = vmul.f32 %v1592, %v1591
        %v1594 = vmul.f32 0.5, %v1593
        %v1595 = vsub.f32 1.5, %v1594
        %v1596 = vmul.f32 %v1591, %v1595
        %vm1597 = vweird.f32 %v1580
        %vm1598 = vweird.f32 %v1591
        %vm1599 = vmor %vm1597, %vm1598
        %v1600 = vsel %vm1599, %v1591, %v1596
        %v1601 = vmul.f32 %v1569, %v1590
        %v1602 = vmul.f32 %v1570, %v1600
        %v1604 = vperm.slane %v605, 0
        %v1606 = vmul.f32 %v1601, %v1604
        %v1607 = vmul.f32 %v1602, %v1604
        %v1609 = vperm.slane %v606, 0
        %v1611 = vadd.f32 %v1606, %v1609
        %v1612 = vadd.f32 %v1607, %v1609
        %v1613 = vpack.c.bf16 %v1612, %v1611
        %v1615 = vperm.slane %v609, 0
        %v1616 = vperm.slane %v609, 1
        %v1617 = vperm.slane %v609, 2
        %v1618 = vperm.slane %v609, 3
        %v1655 = vunpack.c.l.b16 %v659
        %v1656 = vunpack.c.h.b16 %v659
        %v1657 = vunpack.c.l.b16 %v660
        %v1658 = vunpack.c.h.b16 %v660
        %v1659 = vunpack.c.l.b16 %v661
        %v1660 = vunpack.c.h.b16 %v661
        %v1661 = vunpack.c.l.b16 %v662
        %v1662 = vunpack.c.h.b16 %v662
        %v1663 = vunpack.c.l.b16 %v663
        %v1664 = vunpack.c.h.b16 %v663
        %v1665 = vunpack.c.l.b16 %v664
        %v1666 = vunpack.c.h.b16 %v664
        %v1667 = vunpack.c.l.b16 %v665
        %v1668 = vunpack.c.h.b16 %v665
        %v1669 = vunpack.c.l.b16 %v666
        %v1670 = vunpack.c.h.b16 %v666
        %v1671 = vunpack.c.l.b16 %v667
        %v1672 = vunpack.c.h.b16 %v667
        %v1673 = vunpack.c.l.b16 %v668
        %v1674 = vunpack.c.h.b16 %v668
        %v1675 = vunpack.c.l.b16 %v669
        %v1676 = vunpack.c.h.b16 %v669
        %v1677 = vunpack.c.l.b16 %v670
        %v1678 = vunpack.c.h.b16 %v670
        %v1679 = vunpack.c.l.b16 %v671
        %v1680 = vunpack.c.h.b16 %v671
        %v1681 = vunpack.c.l.b16 %v672
        %v1682 = vunpack.c.h.b16 %v672
        %v1683 = vunpack.c.l.b16 %v673
        %v1684 = vunpack.c.h.b16 %v673
        %v1685 = vunpack.c.l.b16 %v674
        %v1686 = vunpack.c.h.b16 %v674
        %v1687 = vunpack.c.l.b16 %v675
        %v1688 = vunpack.c.h.b16 %v675
        %v1689 = vunpack.c.l.b16 %v676
        %v1690 = vunpack.c.h.b16 %v676
        %v1691 = vunpack.c.l.b16 %v677
        %v1692 = vunpack.c.h.b16 %v677
        %v1693 = vunpack.c.l.b16 %v678
        %v1694 = vunpack.c.h.b16 %v678
        %v1695 = vunpack.c.l.b16 %v679
        %v1696 = vunpack.c.h.b16 %v679
        %v1697 = vunpack.c.l.b16 %v680
        %v1698 = vunpack.c.h.b16 %v680
        %v1699 = vunpack.c.l.b16 %v681
        %v1700 = vunpack.c.h.b16 %v681
        %v1701 = vunpack.c.l.b16 %v682
        %v1702 = vunpack.c.h.b16 %v682
        %v1703 = vunpack.c.l.b16 %v683
        %v1704 = vunpack.c.h.b16 %v683
        %v1705 = vunpack.c.l.b16 %v684
        %v1706 = vunpack.c.h.b16 %v684
        %v1707 = vunpack.c.l.b16 %v685
        %v1708 = vunpack.c.h.b16 %v685
        %v1709 = vunpack.c.l.b16 %v686
        %v1710 = vunpack.c.h.b16 %v686
        %v1711 = vunpack.c.l.b16 %v687
        %v1712 = vunpack.c.h.b16 %v687
        %v1713 = vunpack.c.l.b16 %v688
        %v1714 = vunpack.c.h.b16 %v688
        %v1715 = vunpack.c.l.b16 %v689
        %v1716 = vunpack.c.h.b16 %v689
        %v1717 = vunpack.c.l.b16 %v690
        %v1718 = vunpack.c.h.b16 %v690
        %v1719 = vpack.c.b16 %v1659, %v1655
        %v1720 = vpack.c.b16 %v1660, %v1656
        %v1721 = vpack.c.b16 %v1661, %v1657
        %v1722 = vpack.c.b16 %v1662, %v1658
        %v1723 = vpack.c.b16 %v1667, %v1663
        %v1724 = vpack.c.b16 %v1668, %v1664
        %v1725 = vpack.c.b16 %v1669, %v1665
        %v1726 = vpack.c.b16 %v1670, %v1666
        %v1727 = vpack.c.b16 %v1675, %v1671
        %v1728 = vpack.c.b16 %v1676, %v1672
        %v1729 = vpack.c.b16 %v1677, %v1673
        %v1730 = vpack.c.b16 %v1678, %v1674
        %v1731 = vpack.c.b16 %v1683, %v1679
        %v1732 = vpack.c.b16 %v1684, %v1680
        %v1733 = vpack.c.b16 %v1685, %v1681
        %v1734 = vpack.c.b16 %v1686, %v1682
        %v1735 = vpack.c.b16 %v1691, %v1687
        %v1736 = vpack.c.b16 %v1692, %v1688
        %v1737 = vpack.c.b16 %v1693, %v1689
        %v1738 = vpack.c.b16 %v1694, %v1690
        %v1739 = vpack.c.b16 %v1699, %v1695
        %v1740 = vpack.c.b16 %v1700, %v1696
        %v1741 = vpack.c.b16 %v1701, %v1697
        %v1742 = vpack.c.b16 %v1702, %v1698
        %v1743 = vpack.c.b16 %v1707, %v1703
        %v1744 = vpack.c.b16 %v1708, %v1704
        %v1745 = vpack.c.b16 %v1709, %v1705
        %v1746 = vpack.c.b16 %v1710, %v1706
        %v1747 = vpack.c.b16 %v1715, %v1711
        %v1748 = vpack.c.b16 %v1716, %v1712
        %v1749 = vpack.c.b16 %v1717, %v1713
        %v1750 = vpack.c.b16 %v1718, %v1714
        %1783 = vmatpush.bf16.msra.mxu0 %v1747
        %1784 = vmatpush.bf16.msra.mxu0 %v1743
        %1785 = vmatpush.bf16.msra.mxu0 %v1739
        %1786 = vmatpush.bf16.msra.mxu0 %v1735
        %1787 = vmatpush.bf16.msra.mxu0 %v1731
        %1788 = vmatpush.bf16.msra.mxu0 %v1727
        %1789 = vmatpush.bf16.msra.mxu0 %v1723
        %1790 = vmatpush.bf16.msra.mxu0 %v1719
        %1791 = vmatmul.bf16.gmra.mxu0 %v1613
        %v1792 = vpop.f32.mrf.mxu0
        %v1793 = vadd.f32 %v1615, %v1792
        %v1794 = vpop.f32.mrf.mxu0
        %v1795 = vadd.f32 %v1615, %v1794
        %1796 = vdwg.mxu0
        %1797 = vmatpush.bf16.msra.mxu0 %v1748
        %1798 = vmatpush.bf16.msra.mxu0 %v1744
        %1799 = vmatpush.bf16.msra.mxu0 %v1740
        %1800 = vmatpush.bf16.msra.mxu0 %v1736
        %1801 = vmatpush.bf16.msra.mxu0 %v1732
        %1802 = vmatpush.bf16.msra.mxu0 %v1728
        %1803 = vmatpush.bf16.msra.mxu0 %v1724
        %1804 = vmatpush.bf16.msra.mxu0 %v1720
        %1805 = vmatmul.bf16.gmra.mxu0 %v1613
        %v1806 = vpop.f32.mrf.mxu0
        %v1807 = vadd.f32 %v1616, %v1806
        %v1808 = vpop.f32.mrf.mxu0
        %v1809 = vadd.f32 %v1616, %v1808
        %1810 = vdwg.mxu0
        %1811 = vmatpush.bf16.msra.mxu0 %v1749
        %1812 = vmatpush.bf16.msra.mxu0 %v1745
        %1813 = vmatpush.bf16.msra.mxu0 %v1741
        %1814 = vmatpush.bf16.msra.mxu0 %v1737
        %1815 = vmatpush.bf16.msra.mxu0 %v1733
        %1816 = vmatpush.bf16.msra.mxu0 %v1729
        %1817 = vmatpush.bf16.msra.mxu0 %v1725
        %1818 = vmatpush.bf16.msra.mxu0 %v1721
        %1819 = vmatmul.bf16.gmra.mxu0 %v1613
        %v1820 = vpop.f32.mrf.mxu0
        %v1821 = vadd.f32 %v1617, %v1820
        %v1822 = vpop.f32.mrf.mxu0
        %v1823 = vadd.f32 %v1617, %v1822
        %1824 = vdwg.mxu0
        %1825 = vmatpush.bf16.msra.mxu0 %v1750
        %1826 = vmatpush.bf16.msra.mxu0 %v1746
        %1827 = vmatpush.bf16.msra.mxu0 %v1742
        %1828 = vmatpush.bf16.msra.mxu0 %v1738
        %1829 = vmatpush.bf16.msra.mxu0 %v1734
        %1830 = vmatpush.bf16.msra.mxu0 %v1730
        %1831 = vmatpush.bf16.msra.mxu0 %v1726
        %1832 = vmatpush.bf16.msra.mxu0 %v1722
        %1833 = vmatmul.bf16.gmra.mxu0 %v1613
        %v1834 = vpop.f32.mrf.mxu0
        %v1835 = vadd.f32 %v1618, %v1834
        %v1836 = vpop.f32.mrf.mxu0
        %v1837 = vadd.f32 %v1618, %v1836
        %1838 = vdwg.mxu0
        %v1839 = vmul.f32 %v1793, 1.702
        %v1840 = vmul.f32 %v1807, 1.702
        %v1841 = vmul.f32 %v1821, 1.702
        %v1842 = vmul.f32 %v1835, 1.702
        %v1843 = vmul.f32 %v1795, 1.702
        %v1844 = vmul.f32 %v1809, 1.702
        %v1845 = vmul.f32 %v1823, 1.702
        %v1846 = vmul.f32 %v1837, 1.702
        %v1847 = vxor.u32 %v1839, 2147483648
        %v1848 = vxor.u32 %v1840, 2147483648
        %v1849 = vxor.u32 %v1841, 2147483648
        %v1850 = vxor.u32 %v1842, 2147483648
        %v1851 = vxor.u32 %v1843, 2147483648
        %v1852 = vxor.u32 %v1844, 2147483648
        %v1853 = vxor.u32 %v1845, 2147483648
        %v1854 = vxor.u32 %v1846, 2147483648
        %v1855 = vmul.f32 %v1847, 1.442695
        %v1856 = vpow.pop %v1855
        %v1857 = vmul.f32 %v1848, 1.442695
        %v1858 = vpow.pop %v1857
        %v1859 = vmul.f32 %v1849, 1.442695
        %v1860 = vpow.pop %v1859
        %v1861 = vmul.f32 %v1850, 1.442695
        %v1862 = vpow.pop %v1861
        %v1863 = vmul.f32 %v1851, 1.442695
        %v1864 = vpow.pop %v1863
        %v1865 = vmul.f32 %v1852, 1.442695
        %v1866 = vpow.pop %v1865
        %v1867 = vmul.f32 %v1853, 1.442695
        %v1868 = vpow.pop %v1867
        %v1869 = vmul.f32 %v1854, 1.442695
        %v1870 = vpow.pop %v1869
        %v1871 = vadd.f32 %v1856, 1.0
        %v1872 = vadd.f32 %v1858, 1.0
        %v1873 = vadd.f32 %v1860, 1.0
        %v1874 = vadd.f32 %v1862, 1.0
        %v1875 = vadd.f32 %v1864, 1.0
        %v1876 = vadd.f32 %v1866, 1.0
        %v1877 = vadd.f32 %v1868, 1.0
        %v1878 = vadd.f32 %v1870, 1.0
        %v1879 = vrcp.pop %v1871
        %v1880 = vmul.f32 %v1871, %v1879
        %v1881 = vsub.f32 1.0, %v1880
        %v1882 = vmul.f32 %v1879, %v1881
        %v1883 = vadd.f32 %v1879, %v1882
        %vm1884 = vweird.f32 %v1871
        %vm1885 = vweird.f32 %v1879
        %vm1886 = vmor %vm1884, %vm1885
        %v1887 = vsel %vm1886, %v1879, %v1883
        %v1888 = vand.u32 2147483647, %v1871
        %vm1889 = vcmp.eq.f32.partialorder %v1888, 8.507059e+37
        %v1890 = vand.u32 %v1871, 2147483648
        %v1891 = vor.u32 1.1754944e-38, %v1890
        %v1892 = vsel %vm1889, %v1891, %v1887
        %v1893 = vmul.f32 1.0, %v1892
        %v1894 = vrcp.pop %v1872
        %v1895 = vmul.f32 %v1872, %v1894
        %v1896 = vsub.f32 1.0, %v1895
        %v1897 = vmul.f32 %v1894, %v1896
        %v1898 = vadd.f32 %v1894, %v1897
        %vm1899 = vweird.f32 %v1872
        %vm1900 = vweird.f32 %v1894
        %vm1901 = vmor %vm1899, %vm1900
        %v1902 = vsel %vm1901, %v1894, %v1898
        %v1903 = vand.u32 2147483647, %v1872
        %vm1904 = vcmp.eq.f32.partialorder %v1903, 8.507059e+37
        %v1905 = vand.u32 %v1872, 2147483648
        %v1906 = vor.u32 1.1754944e-38, %v1905
        %v1907 = vsel %vm1904, %v1906, %v1902
        %v1908 = vmul.f32 1.0, %v1907
        %v1909 = vrcp.pop %v1873
        %v1910 = vmul.f32 %v1873, %v1909
        %v1911 = vsub.f32 1.0, %v1910
        %v1912 = vmul.f32 %v1909, %v1911
        %v1913 = vadd.f32 %v1909, %v1912
        %vm1914 = vweird.f32 %v1873
        %vm1915 = vweird.f32 %v1909
        %vm1916 = vmor %vm1914, %vm1915
        %v1917 = vsel %vm1916, %v1909, %v1913
        %v1918 = vand.u32 2147483647, %v1873
        %vm1919 = vcmp.eq.f32.partialorder %v1918, 8.507059e+37
        %v1920 = vand.u32 %v1873, 2147483648
        %v1921 = vor.u32 1.1754944e-38, %v1920
        %v1922 = vsel %vm1919, %v1921, %v1917
        %v1923 = vmul.f32 1.0, %v1922
        %v1924 = vrcp.pop %v1874
        %v1925 = vmul.f32 %v1874, %v1924
        %v1926 = vsub.f32 1.0, %v1925
        %v1927 = vmul.f32 %v1924, %v1926
        %v1928 = vadd.f32 %v1924, %v1927
        %vm1929 = vweird.f32 %v1874
        %vm1930 = vweird.f32 %v1924
        %vm1931 = vmor %vm1929, %vm1930
        %v1932 = vsel %vm1931, %v1924, %v1928
        %v1933 = vand.u32 2147483647, %v1874
        %vm1934 = vcmp.eq.f32.partialorder %v1933, 8.507059e+37
        %v1935 = vand.u32 %v1874, 2147483648
        %v1936 = vor.u32 1.1754944e-38, %v1935
        %v1937 = vsel %vm1934, %v1936, %v1932
        %v1938 = vmul.f32 1.0, %v1937
        %v1939 = vrcp.pop %v1875
        %v1940 = vmul.f32 %v1875, %v1939
        %v1941 = vsub.f32 1.0, %v1940
        %v1942 = vmul.f32 %v1939, %v1941
        %v1943 = vadd.f32 %v1939, %v1942
        %vm1944 = vweird.f32 %v1875
        %vm1945 = vweird.f32 %v1939
        %vm1946 = vmor %vm1944, %vm1945
        %v1947 = vsel %vm1946, %v1939, %v1943
        %v1948 = vand.u32 2147483647, %v1875
        %vm1949 = vcmp.eq.f32.partialorder %v1948, 8.507059e+37
        %v1950 = vand.u32 %v1875, 2147483648
        %v1951 = vor.u32 1.1754944e-38, %v1950
        %v1952 = vsel %vm1949, %v1951, %v1947
        %v1953 = vmul.f32 1.0, %v1952
        %v1954 = vrcp.pop %v1876
        %v1955 = vmul.f32 %v1876, %v1954
        %v1956 = vsub.f32 1.0, %v1955
        %v1957 = vmul.f32 %v1954, %v1956
        %v1958 = vadd.f32 %v1954, %v1957
        %vm1959 = vweird.f32 %v1876
        %vm1960 = vweird.f32 %v1954
        %vm1961 = vmor %vm1959, %vm1960
        %v1962 = vsel %vm1961, %v1954, %v1958
        %v1963 = vand.u32 2147483647, %v1876
        %vm1964 = vcmp.eq.f32.partialorder %v1963, 8.507059e+37
        %v1965 = vand.u32 %v1876, 2147483648
        %v1966 = vor.u32 1.1754944e-38, %v1965
        %v1967 = vsel %vm1964, %v1966, %v1962
        %v1968 = vmul.f32 1.0, %v1967
        %v1969 = vrcp.pop %v1877
        %v1970 = vmul.f32 %v1877, %v1969
        %v1971 = vsub.f32 1.0, %v1970
        %v1972 = vmul.f32 %v1969, %v1971
        %v1973 = vadd.f32 %v1969, %v1972
        %vm1974 = vweird.f32 %v1877
        %vm1975 = vweird.f32 %v1969
        %vm1976 = vmor %vm1974, %vm1975
        %v1977 = vsel %vm1976, %v1969, %v1973
        %v1978 = vand.u32 2147483647, %v1877
        %vm1979 = vcmp.eq.f32.partialorder %v1978, 8.507059e+37
        %v1980 = vand.u32 %v1877, 2147483648
        %v1981 = vor.u32 1.1754944e-38, %v1980
        %v1982 = vsel %vm1979, %v1981, %v1977
        %v1983 = vmul.f32 1.0, %v1982
        %v1984 = vrcp.pop %v1878
        %v1985 = vmul.f32 %v1878, %v1984
        %v1986 = vsub.f32 1.0, %v1985
        %v1987 = vmul.f32 %v1984, %v1986
        %v1988 = vadd.f32 %v1984, %v1987
        %vm1989 = vweird.f32 %v1878
        %vm1990 = vweird.f32 %v1984
        %vm1991 = vmor %vm1989, %vm1990
        %v1992 = vsel %vm1991, %v1984, %v1988
        %v1993 = vand.u32 2147483647, %v1878
        %vm1994 = vcmp.eq.f32.partialorder %v1993, 8.507059e+37
        %v1995 = vand.u32 %v1878, 2147483648
        %v1996 = vor.u32 1.1754944e-38, %v1995
        %v1997 = vsel %vm1994, %v1996, %v1992
        %v1998 = vmul.f32 1.0, %v1997
        %v1999 = vmul.f32 %v1793, %v1893
        %v2000 = vmul.f32 %v1807, %v1908
        %v2001 = vmul.f32 %v1821, %v1923
        %v2002 = vmul.f32 %v1835, %v1938
        %v2003 = vmul.f32 %v1795, %v1953
        %v2004 = vmul.f32 %v1809, %v1968
        %v2005 = vmul.f32 %v1823, %v1983
        %v2006 = vmul.f32 %v1837, %v1998
        %v2007 = vpack.c.bf16 %v2003, %v1999
        %v2008 = vpack.c.bf16 %v2004, %v2000
        %v2009 = vpack.c.bf16 %v2005, %v2001
        %v2010 = vpack.c.bf16 %v2006, %v2002
        %v2012 = vperm.slane %v610, 0
        %v2078 = vunpack.c.l.b16 %v691
        %v2079 = vunpack.c.l.b16 %v692
        %v2080 = vunpack.c.l.b16 %v693
        %v2081 = vunpack.c.l.b16 %v694
        %v2082 = vunpack.c.l.b16 %v695
        %v2083 = vunpack.c.l.b16 %v696
        %v2084 = vunpack.c.l.b16 %v697
        %v2085 = vunpack.c.l.b16 %v698
        %v2086 = vunpack.c.l.b16 %v699
        %v2087 = vunpack.c.l.b16 %v700
        %v2088 = vunpack.c.l.b16 %v701
        %v2089 = vunpack.c.l.b16 %v702
        %v2090 = vunpack.c.l.b16 %v703
        %v2091 = vunpack.c.l.b16 %v704
        %v2092 = vunpack.c.l.b16 %v705
        %v2093 = vunpack.c.l.b16 %v706
        %v2094 = vunpack.c.l.b16 %v707
        %v2095 = vunpack.c.l.b16 %v708
        %v2096 = vunpack.c.l.b16 %v709
        %v2097 = vunpack.c.l.b16 %v710
        %v2098 = vunpack.c.l.b16 %v711
        %v2099 = vunpack.c.l.b16 %v712
        %v2100 = vunpack.c.l.b16 %v713
        %v2101 = vunpack.c.l.b16 %v714
        %v2102 = vunpack.c.l.b16 %v715
        %v2103 = vunpack.c.l.b16 %v716
        %v2104 = vunpack.c.l.b16 %v717
        %v2105 = vunpack.c.l.b16 %v718
        %v2106 = vunpack.c.l.b16 %v719
        %v2107 = vunpack.c.l.b16 %v720
        %v2108 = vunpack.c.l.b16 %v721
        %v2109 = vunpack.c.l.b16 %v722
        %v2110 = vunpack.c.l.b16 %v723
        %v2111 = vunpack.c.l.b16 %v724
        %v2112 = vunpack.c.l.b16 %v725
        %v2113 = vunpack.c.l.b16 %v726
        %v2114 = vunpack.c.l.b16 %v727
        %v2115 = vunpack.c.l.b16 %v728
        %v2116 = vunpack.c.l.b16 %v729
        %v2117 = vunpack.c.l.b16 %v730
        %v2118 = vunpack.c.l.b16 %v731
        %v2119 = vunpack.c.l.b16 %v732
        %v2120 = vunpack.c.l.b16 %v733
        %v2121 = vunpack.c.l.b16 %v734
        %v2122 = vunpack.c.l.b16 %v735
        %v2123 = vunpack.c.l.b16 %v736
        %v2124 = vunpack.c.l.b16 %v737
        %v2125 = vunpack.c.l.b16 %v738
        %v2126 = vunpack.c.l.b16 %v739
        %v2127 = vunpack.c.l.b16 %v740
        %v2128 = vunpack.c.l.b16 %v741
        %v2129 = vunpack.c.l.b16 %v742
        %v2130 = vunpack.c.l.b16 %v743
        %v2131 = vunpack.c.l.b16 %v744
        %v2132 = vunpack.c.l.b16 %v745
        %v2133 = vunpack.c.l.b16 %v746
        %v2134 = vunpack.c.l.b16 %v747
        %v2135 = vunpack.c.l.b16 %v748
        %v2136 = vunpack.c.l.b16 %v749
        %v2137 = vunpack.c.l.b16 %v750
        %v2138 = vunpack.c.l.b16 %v751
        %v2139 = vunpack.c.l.b16 %v752
        %v2140 = vunpack.c.l.b16 %v753
        %v2141 = vunpack.c.l.b16 %v754
        %v2142 = vpack.c.b16 %v2079, %v2078
        %v2143 = vpack.c.b16 %v2081, %v2080
        %v2144 = vpack.c.b16 %v2083, %v2082
        %v2145 = vpack.c.b16 %v2085, %v2084
        %v2146 = vpack.c.b16 %v2087, %v2086
        %v2147 = vpack.c.b16 %v2089, %v2088
        %v2148 = vpack.c.b16 %v2091, %v2090
        %v2149 = vpack.c.b16 %v2093, %v2092
        %v2150 = vpack.c.b16 %v2095, %v2094
        %v2151 = vpack.c.b16 %v2097, %v2096
        %v2152 = vpack.c.b16 %v2099, %v2098
        %v2153 = vpack.c.b16 %v2101, %v2100
        %v2154 = vpack.c.b16 %v2103, %v2102
        %v2155 = vpack.c.b16 %v2105, %v2104
        %v2156 = vpack.c.b16 %v2107, %v2106
        %v2157 = vpack.c.b16 %v2109, %v2108
        %v2158 = vpack.c.b16 %v2111, %v2110
        %v2159 = vpack.c.b16 %v2113, %v2112
        %v2160 = vpack.c.b16 %v2115, %v2114
        %v2161 = vpack.c.b16 %v2117, %v2116
        %v2162 = vpack.c.b16 %v2119, %v2118
        %v2163 = vpack.c.b16 %v2121, %v2120
        %v2164 = vpack.c.b16 %v2123, %v2122
        %v2165 = vpack.c.b16 %v2125, %v2124
        %v2166 = vpack.c.b16 %v2127, %v2126
        %v2167 = vpack.c.b16 %v2129, %v2128
        %v2168 = vpack.c.b16 %v2131, %v2130
        %v2169 = vpack.c.b16 %v2133, %v2132
        %v2170 = vpack.c.b16 %v2135, %v2134
        %v2171 = vpack.c.b16 %v2137, %v2136
        %v2172 = vpack.c.b16 %v2139, %v2138
        %v2173 = vpack.c.b16 %v2141, %v2140
        %2206 = vmatpush.bf16.msra.mxu0 %v2149
        %2207 = vmatpush.bf16.msra.mxu0 %v2148
        %2208 = vmatpush.bf16.msra.mxu0 %v2147
        %2209 = vmatpush.bf16.msra.mxu0 %v2146
        %2210 = vmatpush.bf16.msra.mxu0 %v2145
        %2211 = vmatpush.bf16.msra.mxu0 %v2144
        %2212 = vmatpush.bf16.msra.mxu0 %v2143
        %2213 = vmatpush.bf16.msra.mxu0 %v2142
        %2214 = vmatmul.bf16.gmra.mxu0 %v2007
        %v2215 = vpop.f32.mrf.mxu0
        %v2216 = vadd.f32 %v2012, %v2215
        %v2217 = vpop.f32.mrf.mxu0
        %v2218 = vadd.f32 %v2012, %v2217
        %2219 = vdwg.mxu0
        %2220 = vmatpush.bf16.msra.mxu0 %v2157
        %2221 = vmatpush.bf16.msra.mxu0 %v2156
        %2222 = vmatpush.bf16.msra.mxu0 %v2155
        %2223 = vmatpush.bf16.msra.mxu0 %v2154
        %2224 = vmatpush.bf16.msra.mxu0 %v2153
        %2225 = vmatpush.bf16.msra.mxu0 %v2152
        %2226 = vmatpush.bf16.msra.mxu0 %v2151
        %2227 = vmatpush.bf16.msra.mxu0 %v2150
        %2228 = vmatmul.bf16.gmra.mxu0 %v2008
        %v2229 = vpop.f32.mrf.mxu0
        %v2230 = vadd.f32 %v2216, %v2229
        %v2231 = vpop.f32.mrf.mxu0
        %v2232 = vadd.f32 %v2218, %v2231
        %2233 = vdwg.mxu0
        %2234 = vmatpush.bf16.msra.mxu0 %v2165
        %2235 = vmatpush.bf16.msra.mxu0 %v2164
        %2236 = vmatpush.bf16.msra.mxu0 %v2163
        %2237 = vmatpush.bf16.msra.mxu0 %v2162
        %2238 = vmatpush.bf16.msra.mxu0 %v2161
        %2239 = vmatpush.bf16.msra.mxu0 %v2160
        %2240 = vmatpush.bf16.msra.mxu0 %v2159
        %2241 = vmatpush.bf16.msra.mxu0 %v2158
        %2242 = vmatmul.bf16.gmra.mxu0 %v2009
        %v2243 = vpop.f32.mrf.mxu0
        %v2244 = vadd.f32 %v2230, %v2243
        %v2245 = vpop.f32.mrf.mxu0
        %v2246 = vadd.f32 %v2232, %v2245
        %2247 = vdwg.mxu0
        %2248 = vmatpush.bf16.msra.mxu0 %v2173
        %2249 = vmatpush.bf16.msra.mxu0 %v2172
        %2250 = vmatpush.bf16.msra.mxu0 %v2171
        %2251 = vmatpush.bf16.msra.mxu0 %v2170
        %2252 = vmatpush.bf16.msra.mxu0 %v2169
        %2253 = vmatpush.bf16.msra.mxu0 %v2168
        %2254 = vmatpush.bf16.msra.mxu0 %v2167
        %2255 = vmatpush.bf16.msra.mxu0 %v2166
        %2256 = vmatmul.bf16.gmra.mxu0 %v2010
        %v2257 = vpop.f32.mrf.mxu0
        %v2258 = vadd.f32 %v2244, %v2257
        %v2259 = vpop.f32.mrf.mxu0
        %v2260 = vadd.f32 %v2246, %v2259
        %2261 = vdwg.mxu0
        %v2262 = vadd.f32 %v1561, %v2258
        %v2263 = vadd.f32 %v1562, %v2260
        %2264 = vst [vmem:[%s599] sm:$0xff] %v2262
        %2265 = vst [vmem:[%s599 + $0x8] sm:$0xff] %v2263
        %s2266 = sand.u32 %s321, 1
        %s2267 = scalar_lea.sflag [#allocation4], %s2266
        %s2268 = sand.u32 %s321, 1
        %s2269 = smul.addr %s2268, 16
        %s2270 = scalar_lea.vmem [#allocation19], %s2269
        // Predicated region
        $region113: #{tpu_custom_call.1} parent=71 // pred_check
          %p2271 = pneg %p331
        $region114: #{tpu_custom_call.1} parent=71 // pred_check_branch
          %2273 = sbr.rel (%p2271) target = $region116
        $region115: #{tpu_custom_call.1} parent=71 // pred_region
          %2275 = vsyncadd %s2267, 0
          %s2276 = smul.addr %s35, 2
          %s2277 = smul.addr %s2276, 8
          %s2278 = scalar_lea.hbm %s13, %s2277
          %s2279 = sshll.u32 %s2270, 4
          %s2280 = int_to_ptr.vmem [resolvable:$true] %s2279
          %s2281 = sshll.u32 %s2278, 4
          %s2282 = int_to_ptr.hbm [resolvable:$true] %s2281
          %2287 = dma.vmem_to_hbm [thread:$0]  %s2280, 256, %s2282, %s2267, 128, 128, 8
        $region116: #{tpu_custom_call.1} parent=71 // pred_fallthru
          _
      $region72: #{tpu_custom_call.1} parent=5 // pred_fallthru
        _
      %p2288 = scmp.le.s32.totalorder 2, %s30
      // Predicated region
      $region117: #{tpu_custom_call.1} parent=5 // pred_check
        %p2289 = pneg %p2288
      $region118: #{tpu_custom_call.1} parent=5 // pred_check_branch
        %2291 = sbr.rel (%p2289) target = $region120
      $region119: #{tpu_custom_call.1} parent=5 // pred_region
        %s2292 = ssub.s32 %s30, 2
        // Predicated region
        $region121: #{tpu_custom_call.1} parent=119 // pred_check
          %p2293 = pneg %p337
        $region122: #{tpu_custom_call.1} parent=119 // pred_check_branch
          %2295 = sbr.rel (%p2293) target = $region124
        $region123: #{tpu_custom_call.1} parent=119 // pred_region
          %s2296 = sand.u32 %s322, 1
          %s2297 = scalar_lea.sflag [#allocation4], %s2296
          %s2298 = sand.u32 %s322, 1
          %s2299 = smul.addr %s2298, 16
          %s2300 = scalar_lea.vmem [#allocation19], %s2299
          %2302 = dma.done %s2297, 256
        $region124: #{tpu_custom_call.1} parent=119 // pred_fallthru
          _
      $region120: #{tpu_custom_call.1} parent=5 // pred_fallthru
        _
    $region6: #{tpu_custom_call.1} parent=1 // loop_footer
      %s34 = sadd.s32 1, %s30
    $region7: #{tpu_custom_call.1} parent=1 // loop_footer_branch
      %29 = sbr.rel target = $region3
    $region8: #{tpu_custom_call.1} parent=1 // loop_exit
      _
    %2303 = vsyncpa [#allocation3], 1
    %s2304 = scalar_lea.sflag [#allocation3], 1
    %2305 = vsyncpa %s2304, 1
    %2306 = vsyncpa [#allocation6], 1
    %2307 = vsyncpa [#allocation9], 1
    %2308 = vsyncpa [#allocation12], 1
    %2309 = vsyncpa [#allocation15], 1
    %2310 = vsyncpa [#allocation18], 1
    %2311 = vsyncpa [#allocation4], 1
    %s2312 = scalar_lea.sflag [#allocation4], 1
    %2313 = vsyncpa %s2312, 1

</llo_original>
